<compile_context>
chip_gen: v6e
topology: v6e:2x2x1
jax: 0.10.0
libtpu: 0.0.40
codegen_flags: <defaults>
</compile_context>

<pallas_src>
import functools

import jax
import jax.numpy as jnp
from jax.experimental import pallas as pl
from jax.experimental.pallas import tpu as pltpu


def _upsample_conv_kernel(x_ref, w_ref, b_ref, o_ref, *, lout, ksize, num_layers):
    # x_ref: (1, C, L_in)         w_ref: (num_layers, C, K*C)
    # b_ref: (num_layers, C, 1)   o_ref: (1, C, N)  with N = L_in * lout
    c = x_ref.shape[1]
    l_in = x_ref.shape[2]
    n_out = l_in * lout
    pad = (ksize - 1) // 2

    # --- upsample: x.repeat(1, 1, Lout) == tile the sequence Lout times ------
    x = x_ref[0].astype(jnp.float32)                      # (C, L_in)
    if l_in == 1:
        y = jnp.broadcast_to(x, (c, n_out))               # pure lane broadcast
    else:
        y = jnp.tile(x, (1, lout))                        # (C, N)

    # Zero strips (widths 1..pad) reused by every layer's im2col.
    zstrip = {w: jnp.zeros((c, w), jnp.float32) for w in range(1, pad + 1)}

    # --- fused Conv1d + ReLU layers (static loop, stays in VMEM) -------------
    for layer in range(num_layers):
        # im2col built directly from y: row block k holds y shifted by
        # s = k - pad with zero fill, i.e. xcol[k*C + c, n] = y_padded[c, n+k].
        # Matches the wrapper weight layout w2d[o, k*C + c] = w[o, c, k].
        blocks = []
        for k in range(ksize):
            s = k - pad
            if s < 0:
                blk = jnp.concatenate([zstrip[-s], y[:, :n_out + s]], axis=1)
            elif s == 0:
                blk = y
            else:
                blk = jnp.concatenate([y[:, s:], zstrip[s]], axis=1)
            blocks.append(blk)
        xcol = jnp.concatenate(blocks, axis=0)                     # (K*C, N)

        out = jnp.dot(w_ref[layer], xcol,
                      preferred_element_type=jnp.float32)          # (C, N)
        y = jnp.maximum(out + b_ref[layer], 0.0)                   # bias + ReLU

    o_ref[0] = y.astype(o_ref.dtype)


def conv1x_upsample_block(x, weights, biases, *, lout):
    """Forward pass of Conv1x_Upsample_Block.

    x:       (B, C, L_in) float32
    weights: list of (C, C, K) Conv1d weights (PyTorch (out, in, k) layout)
    biases:  list of (C,) Conv1d biases
    returns  (B, C, L_in * lout)
    """
    B, C, L_in = x.shape
    num_layers = len(weights)
    K = weights[0].shape[-1]
    assert all(w.shape == (C, C, K) for w in weights)
    N = L_in * lout

    # Lane-dense 2-D weight layout: w2d[o, k*C + c] = w[o, c, k].
    w2d = jnp.stack(
        [w.transpose(0, 2, 1).reshape(C, K * C) for w in weights], axis=0
    ).astype(jnp.float32)
    b2d = jnp.stack([b.reshape(C, 1) for b in biases], axis=0).astype(jnp.float32)

    kernel = functools.partial(_upsample_conv_kernel, lout=lout, ksize=K,
                               num_layers=num_layers)

    return pl.pallas_call(
        kernel,
        out_shape=jax.ShapeDtypeStruct((B, C, N), x.dtype),
        grid_spec=pltpu.PrefetchScalarGridSpec(
            num_scalar_prefetch=0,
            grid=(B,),
            in_specs=[
                pl.BlockSpec((1, C, L_in), lambda b: (b, 0, 0)),
                # Constant index_maps: weights/biases DMA'd once, stay resident.
                pl.BlockSpec((num_layers, C, K * C), lambda b: (0, 0, 0)),
                pl.BlockSpec((num_layers, C, 1), lambda b: (0, 0, 0)),
            ],
            out_specs=pl.BlockSpec((1, C, N), lambda b: (b, 0, 0)),
        ),
        compiler_params=pltpu.CompilerParams(
            dimension_semantics=("parallel",)),   # batch across v7x's 2 TCs
    )(x, w2d, b2d)


def conv1x_upsample_ref(x, weights, biases, *, lout):
    """Plain-JAX reference (mirrors torch repeat + Conv1d(pad=3) + ReLU x3)."""
    y = jnp.tile(x, (1, 1, lout)).astype(jnp.float32)
    for w, b in zip(weights, biases):
        K = w.shape[-1]
        pad = (K - 1) // 2
        N = y.shape[-1]
        yp = jnp.pad(y, ((0, 0), (0, 0), (pad, pad)))
        out = jnp.zeros(y.shape, jnp.float32)
        for k in range(K):
            out = out + jnp.einsum("oc,bcn->bon", w[:, :, k],
                                   yp[:, :, k:k + N],
                                   precision=jax.lax.Precision.HIGHEST)
        y = jnp.maximum(out + b[None, :, None], 0.0)
    return y


if __name__ == "__main__":
    key = jax.random.PRNGKey(0)

    # Module defaults: schedule_up=[16, 64, 128], in_channels=64, kernels [7,7,7].
    schedule_up = [16, 64, 128]
    in_channels = 64
    kernel_list = [7, 7, 7]
    Lout = schedule_up[-1]            # 128
    B, L_in = 2, 1                    # "Conv1x": per-sample length-1 feature

    keys = jax.random.split(key, 1 + 2 * len(kernel_list))
    x = jax.random.normal(keys[0], (B, in_channels, L_in), jnp.float32)

    # Deterministic PyTorch Conv1d-style uniform init.
    weights, biases = [], []
    for i, K in enumerate(kernel_list):
        bound = 1.0 / jnp.sqrt(jnp.float32(in_channels * K))
        weights.append(jax.random.uniform(
            keys[1 + 2 * i], (in_channels, in_channels, K),
            jnp.float32, -bound, bound))
        biases.append(jax.random.uniform(
            keys[2 + 2 * i], (in_channels,), jnp.float32, -bound, bound))

    out = conv1x_upsample_block(x, weights, biases, lout=Lout)
    out = jax.block_until_ready(out)

    ref = conv1x_upsample_ref(x, weights, biases, lout=Lout)
    assert out.shape == (B, in_channels, L_in * Lout)
    assert jnp.allclose(out, ref, atol=1e-4, rtol=1e-4), "mismatch vs reference"

    print("KERNEL_OK")
</pallas_src>

<mosaic_0001>
module attributes {stable_mosaic.version = 11 : i64} {
  func.func @_upsample_conv_kernel(%arg0: i32, %arg1: memref<1x64x1xf32, #tpu.memory_space<vmem>>, %arg2: memref<3x64x448xf32, #tpu.memory_space<vmem>>, %arg3: memref<3x64x1xf32, #tpu.memory_space<vmem>>, %arg4: memref<1x64x128xf32, #tpu.memory_space<vmem>>) attributes {dimension_semantics = [#tpu.dimension_semantics<parallel>], iteration_bounds = array<i64: 2>, scalar_prefetch = 0 : i64, scratch_operands = 0 : i64, tpu.core_type = #tpu.core_type<tc>, window_params = [{transform_indices = @transform_0, window_bounds = array<i64: 1, 64, 1>}, {pipeline_mode = #tpu.pipeline_mode<synchronous>, transform_indices = @transform_1, window_bounds = array<i64: 3, 64, 448>}, {pipeline_mode = #tpu.pipeline_mode<synchronous>, transform_indices = @transform_2, window_bounds = array<i64: 3, 64, 1>}, {transform_indices = @transform_3, window_bounds = array<i64: 1, 64, 128>}]} {
    %c0 = arith.constant 0 : index
    %c0_0 = arith.constant 0 : index
    %c0_1 = arith.constant 0 : index
    %0 = vector.load %arg1[%c0, %c0_0, %c0_1] : memref<1x64x1xf32, #tpu.memory_space<vmem>>, vector<1x64x1xf32>
    %1 = vector.shape_cast %0 : vector<1x64x1xf32> to vector<64x1xf32>
    %2 = vector.shape_cast %1 : vector<64x1xf32> to vector<64x1xf32>
    %3 = vector.broadcast %2 : vector<64x1xf32> to vector<64x128xf32>
    %cst = arith.constant 0.000000e+00 : f32
    %4 = vector.broadcast %cst : f32 to vector<64x1xf32>
    %cst_2 = arith.constant 0.000000e+00 : f32
    %5 = vector.broadcast %cst_2 : f32 to vector<64x2xf32>
    %cst_3 = arith.constant 0.000000e+00 : f32
    %6 = vector.broadcast %cst_3 : f32 to vector<64x3xf32>
    %7 = vector.extract_strided_slice %3 {offsets = [0, 0], sizes = [64, 125], strides = [1, 1]} : vector<64x128xf32> to vector<64x125xf32>
    %8 = tpu.concatenate %6, %7 in 1 : vector<64x3xf32>, vector<64x125xf32> -> vector<64x128xf32>
    %9 = vector.extract_strided_slice %3 {offsets = [0, 0], sizes = [64, 126], strides = [1, 1]} : vector<64x128xf32> to vector<64x126xf32>
    %10 = tpu.concatenate %5, %9 in 1 : vector<64x2xf32>, vector<64x126xf32> -> vector<64x128xf32>
    %11 = vector.extract_strided_slice %3 {offsets = [0, 0], sizes = [64, 127], strides = [1, 1]} : vector<64x128xf32> to vector<64x127xf32>
    %12 = tpu.concatenate %4, %11 in 1 : vector<64x1xf32>, vector<64x127xf32> -> vector<64x128xf32>
    %13 = vector.extract_strided_slice %3 {offsets = [0, 1], sizes = [64, 127], strides = [1, 1]} : vector<64x128xf32> to vector<64x127xf32>
    %14 = tpu.concatenate %13, %4 in 1 : vector<64x127xf32>, vector<64x1xf32> -> vector<64x128xf32>
    %15 = vector.extract_strided_slice %3 {offsets = [0, 2], sizes = [64, 126], strides = [1, 1]} : vector<64x128xf32> to vector<64x126xf32>
    %16 = tpu.concatenate %15, %5 in 1 : vector<64x126xf32>, vector<64x2xf32> -> vector<64x128xf32>
    %17 = vector.extract_strided_slice %3 {offsets = [0, 3], sizes = [64, 125], strides = [1, 1]} : vector<64x128xf32> to vector<64x125xf32>
    %18 = tpu.concatenate %17, %6 in 1 : vector<64x125xf32>, vector<64x3xf32> -> vector<64x128xf32>
    %19 = tpu.concatenate %8, %10, %12, %3, %14, %16, %18 in 0 : vector<64x128xf32>, vector<64x128xf32>, vector<64x128xf32>, vector<64x128xf32>, vector<64x128xf32>, vector<64x128xf32>, vector<64x128xf32> -> vector<448x128xf32>
    %c0_4 = arith.constant 0 : index
    %c0_5 = arith.constant 0 : index
    %c0_6 = arith.constant 0 : index
    %20 = vector.load %arg2[%c0_4, %c0_5, %c0_6] : memref<3x64x448xf32, #tpu.memory_space<vmem>>, vector<1x64x448xf32>
    %21 = vector.shape_cast %20 : vector<1x64x448xf32> to vector<64x448xf32>
    %cst_7 = arith.constant dense<0.000000e+00> : vector<64x128xf32>
    %22 = tpu.matmul %21, %19, %cst_7 {dimension_numbers = #tpu.dot_dimension_numbers<[1], [0], [0], [1], [0, 0, 1, 1], [], []>} : vector<64x448xf32>, vector<448x128xf32>, vector<64x128xf32> -> vector<64x128xf32>
    %c0_8 = arith.constant 0 : index
    %c0_9 = arith.constant 0 : index
    %c0_10 = arith.constant 0 : index
    %23 = vector.load %arg3[%c0_8, %c0_9, %c0_10] : memref<3x64x1xf32, #tpu.memory_space<vmem>>, vector<1x64x1xf32>
    %24 = vector.shape_cast %23 : vector<1x64x1xf32> to vector<64x1xf32>
    %25 = vector.broadcast %24 : vector<64x1xf32> to vector<64x128xf32>
    %26 = arith.addf %22, %25 : vector<64x128xf32>
    %cst_11 = arith.constant 0.000000e+00 : f32
    %27 = vector.broadcast %cst_11 : f32 to vector<64x128xf32>
    %28 = arith.maximumf %26, %27 : vector<64x128xf32>
    %29 = vector.extract_strided_slice %28 {offsets = [0, 0], sizes = [64, 125], strides = [1, 1]} : vector<64x128xf32> to vector<64x125xf32>
    %30 = tpu.concatenate %6, %29 in 1 : vector<64x3xf32>, vector<64x125xf32> -> vector<64x128xf32>
    %31 = vector.extract_strided_slice %28 {offsets = [0, 0], sizes = [64, 126], strides = [1, 1]} : vector<64x128xf32> to vector<64x126xf32>
    %32 = tpu.concatenate %5, %31 in 1 : vector<64x2xf32>, vector<64x126xf32> -> vector<64x128xf32>
    %33 = vector.extract_strided_slice %28 {offsets = [0, 0], sizes = [64, 127], strides = [1, 1]} : vector<64x128xf32> to vector<64x127xf32>
    %34 = tpu.concatenate %4, %33 in 1 : vector<64x1xf32>, vector<64x127xf32> -> vector<64x128xf32>
    %35 = vector.extract_strided_slice %28 {offsets = [0, 1], sizes = [64, 127], strides = [1, 1]} : vector<64x128xf32> to vector<64x127xf32>
    %36 = tpu.concatenate %35, %4 in 1 : vector<64x127xf32>, vector<64x1xf32> -> vector<64x128xf32>
    %37 = vector.extract_strided_slice %28 {offsets = [0, 2], sizes = [64, 126], strides = [1, 1]} : vector<64x128xf32> to vector<64x126xf32>
    %38 = tpu.concatenate %37, %5 in 1 : vector<64x126xf32>, vector<64x2xf32> -> vector<64x128xf32>
    %39 = vector.extract_strided_slice %28 {offsets = [0, 3], sizes = [64, 125], strides = [1, 1]} : vector<64x128xf32> to vector<64x125xf32>
    %40 = tpu.concatenate %39, %6 in 1 : vector<64x125xf32>, vector<64x3xf32> -> vector<64x128xf32>
    %41 = tpu.concatenate %30, %32, %34, %28, %36, %38, %40 in 0 : vector<64x128xf32>, vector<64x128xf32>, vector<64x128xf32>, vector<64x128xf32>, vector<64x128xf32>, vector<64x128xf32>, vector<64x128xf32> -> vector<448x128xf32>
    %c1 = arith.constant 1 : index
    %c0_12 = arith.constant 0 : index
    %c0_13 = arith.constant 0 : index
    %42 = vector.load %arg2[%c1, %c0_12, %c0_13] : memref<3x64x448xf32, #tpu.memory_space<vmem>>, vector<1x64x448xf32>
    %43 = vector.shape_cast %42 : vector<1x64x448xf32> to vector<64x448xf32>
    %cst_14 = arith.constant dense<0.000000e+00> : vector<64x128xf32>
    %44 = tpu.matmul %43, %41, %cst_14 {dimension_numbers = #tpu.dot_dimension_numbers<[1], [0], [0], [1], [0, 0, 1, 1], [], []>} : vector<64x448xf32>, vector<448x128xf32>, vector<64x128xf32> -> vector<64x128xf32>
    %c1_15 = arith.constant 1 : index
    %c0_16 = arith.constant 0 : index
    %c0_17 = arith.constant 0 : index
    %45 = vector.load %arg3[%c1_15, %c0_16, %c0_17] : memref<3x64x1xf32, #tpu.memory_space<vmem>>, vector<1x64x1xf32>
    %46 = vector.shape_cast %45 : vector<1x64x1xf32> to vector<64x1xf32>
    %47 = vector.broadcast %46 : vector<64x1xf32> to vector<64x128xf32>
    %48 = arith.addf %44, %47 : vector<64x128xf32>
    %cst_18 = arith.constant 0.000000e+00 : f32
    %49 = vector.broadcast %cst_18 : f32 to vector<64x128xf32>
    %50 = arith.maximumf %48, %49 : vector<64x128xf32>
    %51 = vector.extract_strided_slice %50 {offsets = [0, 0], sizes = [64, 125], strides = [1, 1]} : vector<64x128xf32> to vector<64x125xf32>
    %52 = tpu.concatenate %6, %51 in 1 : vector<64x3xf32>, vector<64x125xf32> -> vector<64x128xf32>
    %53 = vector.extract_strided_slice %50 {offsets = [0, 0], sizes = [64, 126], strides = [1, 1]} : vector<64x128xf32> to vector<64x126xf32>
    %54 = tpu.concatenate %5, %53 in 1 : vector<64x2xf32>, vector<64x126xf32> -> vector<64x128xf32>
    %55 = vector.extract_strided_slice %50 {offsets = [0, 0], sizes = [64, 127], strides = [1, 1]} : vector<64x128xf32> to vector<64x127xf32>
    %56 = tpu.concatenate %4, %55 in 1 : vector<64x1xf32>, vector<64x127xf32> -> vector<64x128xf32>
    %57 = vector.extract_strided_slice %50 {offsets = [0, 1], sizes = [64, 127], strides = [1, 1]} : vector<64x128xf32> to vector<64x127xf32>
    %58 = tpu.concatenate %57, %4 in 1 : vector<64x127xf32>, vector<64x1xf32> -> vector<64x128xf32>
    %59 = vector.extract_strided_slice %50 {offsets = [0, 2], sizes = [64, 126], strides = [1, 1]} : vector<64x128xf32> to vector<64x126xf32>
    %60 = tpu.concatenate %59, %5 in 1 : vector<64x126xf32>, vector<64x2xf32> -> vector<64x128xf32>
    %61 = vector.extract_strided_slice %50 {offsets = [0, 3], sizes = [64, 125], strides = [1, 1]} : vector<64x128xf32> to vector<64x125xf32>
    %62 = tpu.concatenate %61, %6 in 1 : vector<64x125xf32>, vector<64x3xf32> -> vector<64x128xf32>
    %63 = tpu.concatenate %52, %54, %56, %50, %58, %60, %62 in 0 : vector<64x128xf32>, vector<64x128xf32>, vector<64x128xf32>, vector<64x128xf32>, vector<64x128xf32>, vector<64x128xf32>, vector<64x128xf32> -> vector<448x128xf32>
    %c2 = arith.constant 2 : index
    %c0_19 = arith.constant 0 : index
    %c0_20 = arith.constant 0 : index
    %64 = vector.load %arg2[%c2, %c0_19, %c0_20] : memref<3x64x448xf32, #tpu.memory_space<vmem>>, vector<1x64x448xf32>
    %65 = vector.shape_cast %64 : vector<1x64x448xf32> to vector<64x448xf32>
    %cst_21 = arith.constant dense<0.000000e+00> : vector<64x128xf32>
    %66 = tpu.matmul %65, %63, %cst_21 {dimension_numbers = #tpu.dot_dimension_numbers<[1], [0], [0], [1], [0, 0, 1, 1], [], []>} : vector<64x448xf32>, vector<448x128xf32>, vector<64x128xf32> -> vector<64x128xf32>
    %c2_22 = arith.constant 2 : index
    %c0_23 = arith.constant 0 : index
    %c0_24 = arith.constant 0 : index
    %67 = vector.load %arg3[%c2_22, %c0_23, %c0_24] : memref<3x64x1xf32, #tpu.memory_space<vmem>>, vector<1x64x1xf32>
    %68 = vector.shape_cast %67 : vector<1x64x1xf32> to vector<64x1xf32>
    %69 = vector.broadcast %68 : vector<64x1xf32> to vector<64x128xf32>
    %70 = arith.addf %66, %69 : vector<64x128xf32>
    %cst_25 = arith.constant 0.000000e+00 : f32
    %71 = vector.broadcast %cst_25 : f32 to vector<64x128xf32>
    %72 = arith.maximumf %70, %71 : vector<64x128xf32>
    %c0_26 = arith.constant 0 : index
    %c0_27 = arith.constant 0 : index
    %c0_28 = arith.constant 0 : index
    %73 = vector.load %arg4[%c0_26, %c0_27, %c0_28] : memref<1x64x128xf32, #tpu.memory_space<vmem>>, vector<1x64x128xf32>
    %74 = vector.shape_cast %73 : vector<1x64x128xf32> to vector<64x128xf32>
    %75 = vector.shape_cast %72 : vector<64x128xf32> to vector<1x64x128xf32>
    tpu.vector_store %arg4[%c0_26, %c0_27, %c0_28], %75 {strides = array<i32>} : memref<1x64x128xf32, #tpu.memory_space<vmem>>, vector<1x64x128xf32>,
    return
  }
  func.func @transform_0(%arg0: i32) -> (i32, i32, i32) {
    %c0_i32 = arith.constant 0 : i32
    %c0_i32_0 = arith.constant 0 : i32
    %c0_i32_1 = arith.constant 0 : i32
    return %arg0, %c0_i32, %c0_i32_0 : i32, i32, i32
  }
  func.func @transform_1(%arg0: i32) -> (i32, i32, i32) {
    %c0_i32 = arith.constant 0 : i32
    %c0_i32_0 = arith.constant 0 : i32
    %c0_i32_1 = arith.constant 0 : i32
    %c0_i32_2 = arith.constant 0 : i32
    return %c0_i32, %c0_i32_0, %c0_i32_1 : i32, i32, i32
  }
  func.func @transform_2(%arg0: i32) -> (i32, i32, i32) {
    %c0_i32 = arith.constant 0 : i32
    %c0_i32_0 = arith.constant 0 : i32
    %c0_i32_1 = arith.constant 0 : i32
    %c0_i32_2 = arith.constant 0 : i32
    return %c0_i32, %c0_i32_0, %c0_i32_1 : i32, i32, i32
  }
  func.func @transform_3(%arg0: i32) -> (i32, i32, i32) {
    %c0_i32 = arith.constant 0 : i32
    %c0_i32_0 = arith.constant 0 : i32
    %c0_i32_1 = arith.constant 0 : i32
    return %arg0, %c0_i32, %c0_i32_0 : i32, i32, i32
  }
}

</mosaic_0001>

<llo_original>
// kernel: tpu_custom_call.1
$region0: #{tpu_custom_call.1}
  #allocation0 [shape = 'u32[]', space=smem, size = 0x4, offset = 0x4, fixed_abs, tag = 'smem constant byte address 0x4 - core index']
  #allocation1 [shape = 'u32[144,128]{1,0:T(1,128)}', space=vmem, size = 0x12000, scoped, tag = 'internal scratch']
  %s0 = inlined_call_operand.vmem [shape: f32[2,64,1], index: 0, kind: input, shape index: {}]
  %s1 = inlined_call_operand.hbm [shape: f32[3,64,448], index: 1, kind: input, shape index: {}]
  %s2 = inlined_call_operand.vmem [shape: f32[3,64,1], index: 2, kind: input, shape index: {}]
  %s3 = inlined_call_operand.hbm [shape: f32[2,64,128], index: 3, kind: output, shape index: {}]
  %s4 = sld [smem:[#allocation0]]
  $region49: #{tpu_custom_call.1} parent=0
    _
  %s6 = ssub.s32 1, %s4
  %s7 = scalar_select 0, %s6, %s4
  $region1: #{tpu_custom_call.1} parent=0
    #allocation2 [shape = 'u8[393216]{0}', space=vmem, size = 0x60000, scoped, tag = 'input window, operand 1, single buffered']
    #allocation3 [shape = 's32[2]{0}', space=sflag, size = 0x8, scoped, tag = 'scoped memory for tpu_custom_call.1']
    #allocation4 [shape = 's32[2]{0}', space=sflag, size = 0x8, scoped, tag = 'scoped memory for tpu_custom_call.1']
    #allocation5 [shape = 'u8[65536]{0}', space=vmem, size = 0x10000, scoped, tag = 'output window, operand 0']
    %8 = vsyncpa [#allocation3], 0
    %9 = vsyncpa [#allocation4], 0
    %s10 = scalar_lea.sflag [#allocation4], 1
    %11 = vsyncpa %s10, 0
    loop: start=0, step=1, limit=4
    $region2: #{tpu_custom_call.1} parent=1 // loop_pre_header
      _
    $region3: #{tpu_custom_call.1} parent=1 // loop_header
      %s13 = sphi 0, %s17
      %p14 = scmp.ge.s32.totalorder %s13, 4
      %s23 = sphi 0, %s25
      %s26 = sphi 0, %s23
      %s27 = sphi 0, %s26
      %s43 = sphi 0, %s27
      %s47 = sphi 0, %s47
      %s49 = sphi 0, %s47
      %s50 = sphi 0, %s49
      %s64 = sphi 0, %s50
      %s68 = sphi 0, %s68
      %s70 = sphi 0, %s68
      %s71 = sphi 0, %s70
      %s85 = sphi 0, %s71
      %s91 = sphi 0, %s93
      %s94 = sphi 0, %s91
      %s95 = sphi 0, %s94
      %s111 = sphi 0, %s95
    $region4: #{tpu_custom_call.1} parent=1 // loop_header_branch
      %16 = sbr.rel (%p14) target = $region8
    $region5: #{tpu_custom_call.1} parent=1 // loop_body
      %s18 = ssub.s32 %s13, 1
      %s19 = ssub.s32 %s13, 2
      %s20 = sadd.s32 %s13, 1
      %s21 = ssub.s32 %s13, %s20
      %p22 = scmp.eq.s32.totalorder %s21, 0
      %s24 = sadd.s32 %s23, 1
      %s25 = scalar_select %p22, %s23, %s24
      %p28 = pneg %p22
      %p29 = scmp.eq.s32.totalorder %s13, 1
      %p30 = por %p28, %p29
      %p31 = scmp.ne.s32.totalorder %s23, %s26
      %p32 = scmp.eq.s32.totalorder %s13, 0
      %p33 = por %p31, %p32
      %p34 = scmp.ne.s32.totalorder %s23, %s26
      %p35 = scmp.eq.s32.totalorder %s18, 1
      %p36 = por %p34, %p35
      %p37 = scmp.ne.s32.totalorder %s26, %s27
      %p38 = scmp.eq.s32.totalorder %s18, 0
      %p39 = por %p37, %p38
      %p40 = scmp.ne.s32.totalorder %s26, %s27
      %p41 = scmp.eq.s32.totalorder %s19, 1
      %p42 = por %p40, %p41
      %p44 = scmp.ne.s32.totalorder %s27, %s43
      %p45 = scmp.eq.s32.totalorder %s19, 0
      %p46 = por %p44, %p45
      %s48 = sadd.s32 %s47, 1
      %p51 = scmp.eq.s32.totalorder %s13, 1
      %p52 = scmp.ne.s32.totalorder %s47, %s49
      %p53 = scmp.eq.s32.totalorder %s13, 0
      %p54 = por %p52, %p53
      %p55 = scmp.ne.s32.totalorder %s47, %s49
      %p56 = scmp.eq.s32.totalorder %s18, 1
      %p57 = por %p55, %p56
      %p58 = scmp.ne.s32.totalorder %s49, %s50
      %p59 = scmp.eq.s32.totalorder %s18, 0
      %p60 = por %p58, %p59
      %p61 = scmp.ne.s32.totalorder %s49, %s50
      %p62 = scmp.eq.s32.totalorder %s19, 1
      %p63 = por %p61, %p62
      %p65 = scmp.ne.s32.totalorder %s50, %s64
      %p66 = scmp.eq.s32.totalorder %s19, 0
      %p67 = por %p65, %p66
      %s69 = sadd.s32 %s68, 1
      %p72 = scmp.eq.s32.totalorder %s13, 1
      %p73 = scmp.ne.s32.totalorder %s68, %s70
      %p74 = scmp.eq.s32.totalorder %s13, 0
      %p75 = por %p73, %p74
      %p76 = scmp.ne.s32.totalorder %s68, %s70
      %p77 = scmp.eq.s32.totalorder %s18, 1
      %p78 = por %p76, %p77
      %p79 = scmp.ne.s32.totalorder %s70, %s71
      %p80 = scmp.eq.s32.totalorder %s18, 0
      %p81 = por %p79, %p80
      %p82 = scmp.ne.s32.totalorder %s70, %s71
      %p83 = scmp.eq.s32.totalorder %s19, 1
      %p84 = por %p82, %p83
      %p86 = scmp.ne.s32.totalorder %s71, %s85
      %p87 = scmp.eq.s32.totalorder %s19, 0
      %p88 = por %p86, %p87
      %s89 = ssub.s32 %s13, %s20
      %p90 = scmp.eq.s32.totalorder %s89, 0
      %s92 = sadd.s32 %s91, 1
      %s93 = scalar_select %p90, %s91, %s92
      %p96 = pneg %p90
      %p97 = scmp.eq.s32.totalorder %s13, 1
      %p98 = por %p96, %p97
      %p99 = scmp.ne.s32.totalorder %s91, %s94
      %p100 = scmp.eq.s32.totalorder %s13, 0
      %p101 = por %p99, %p100
      %p102 = scmp.ne.s32.totalorder %s91, %s94
      %p103 = scmp.eq.s32.totalorder %s18, 1
      %p104 = por %p102, %p103
      %p105 = scmp.ne.s32.totalorder %s94, %s95
      %p106 = scmp.eq.s32.totalorder %s18, 0
      %p107 = por %p105, %p106
      %p108 = scmp.ne.s32.totalorder %s94, %s95
      %p109 = scmp.eq.s32.totalorder %s19, 1
      %p110 = por %p108, %p109
      %p112 = scmp.ne.s32.totalorder %s95, %s111
      %p113 = scmp.eq.s32.totalorder %s19, 0
      %p114 = por %p112, %p113
      %p115 = scmp.le.s32.totalorder 1, %s13
      %p116 = scmp.lt.s32.totalorder %s13, 3
      %p117 = pnand %p115, %p116
      %p118 = pneg %p117
      // Predicated region
      $region9: #{tpu_custom_call.1} parent=5 // pred_check
        _
      $region10: #{tpu_custom_call.1} parent=5 // pred_check_branch
        %120 = sbr.rel (%p117) target = $region12
      $region11: #{tpu_custom_call.1} parent=5 // pred_region
        %s121 = ssub.s32 %s13, 1
        // Predicated region
        $region13: #{tpu_custom_call.1} parent=11 // pred_check
          %p122 = pneg %p60
        $region14: #{tpu_custom_call.1} parent=11 // pred_check_branch
          %124 = sbr.rel (%p122) target = $region16
        $region15: #{tpu_custom_call.1} parent=11 // pred_region
          %s126 = ssub.s32 12288, 12288
          %127 = vsyncadd [#allocation3], %s126
          %s128 = sshll.u32 [#allocation2], 4
          %s129 = int_to_ptr.vmem [resolvable:$true] %s128
          %134 = dma.hbm_to_vmem [thread:$0]  %s1, 12288, %s129, [#allocation3], 512, 512, 32
        $region16: #{tpu_custom_call.1} parent=11 // pred_fallthru
          _
        // Predicated region
        $region17: #{tpu_custom_call.1} parent=11 // pred_check
          %p135 = pneg %p81
        $region18: #{tpu_custom_call.1} parent=11 // pred_check_branch
          %137 = sbr.rel (%p135) target = $region20
        $region19: #{tpu_custom_call.1} parent=11 // pred_region
          _
        $region20: #{tpu_custom_call.1} parent=11 // pred_fallthru
          _
      $region12: #{tpu_custom_call.1} parent=5 // pred_fallthru
        _
      %p138 = scmp.lt.s32.totalorder %s13, 2
      // Predicated region
      $region21: #{tpu_custom_call.1} parent=5 // pred_check
        %p139 = pneg %p138
      $region22: #{tpu_custom_call.1} parent=5 // pred_check_branch
        %141 = sbr.rel (%p139) target = $region24
      $region23: #{tpu_custom_call.1} parent=5 // pred_region
        // Predicated region
        $region25: #{tpu_custom_call.1} parent=23 // pred_check
          %p142 = pneg %p33
        $region26: #{tpu_custom_call.1} parent=23 // pred_check_branch
          %144 = sbr.rel (%p142) target = $region28
        $region27: #{tpu_custom_call.1} parent=23 // pred_region
          %p145 = scmp.lt.s32.totalorder %s13, 1
          %s146 = scalar_select %p145, %s13, 1
          %s147 = smul.addr %s146, 8
          %s148 = smul.addr %s147, 8
          %s149 = scalar_lea.vmem %s0, %s148
        $region28: #{tpu_custom_call.1} parent=23 // pred_fallthru
          _
      $region24: #{tpu_custom_call.1} parent=5 // pred_fallthru
        _
      %p150 = scmp.le.s32.totalorder 1, %s13
      %p151 = scmp.lt.s32.totalorder %s13, 3
      %p152 = pnand %p150, %p151
      %p153 = pneg %p152
      // Predicated region
      $region29: #{tpu_custom_call.1} parent=5 // pred_check
        _
      $region30: #{tpu_custom_call.1} parent=5 // pred_check_branch
        %155 = sbr.rel (%p152) target = $region32
      $region31: #{tpu_custom_call.1} parent=5 // pred_region
        %s156 = ssub.s32 %s13, 1
        // Predicated region
        $region33: #{tpu_custom_call.1} parent=31 // pred_check
          %p157 = pneg %p60
        $region34: #{tpu_custom_call.1} parent=31 // pred_check_branch
          %159 = sbr.rel (%p157) target = $region36
        $region35: #{tpu_custom_call.1} parent=31 // pred_region
          %160 = dma.done [#allocation3], 12288
        $region36: #{tpu_custom_call.1} parent=31 // pred_fallthru
          _
        %p161 = scmp.lt.s32.totalorder %s18, 1
        %s162 = scalar_select %p161, %s18, 1
        %s163 = smul.addr %s162, 8
        %s164 = smul.addr %s163, 8
        %s165 = scalar_lea.vmem %s0, %s164
        %p166 = pneg %p39
        %p167 = pneg %p36
        %p168 = pneg %p60
        %p169 = pneg %p57
        %p170 = pneg %p81
        %p171 = pneg %p78
        %p172 = pneg %p107
        %p173 = pneg %p104
        %s174 = sand.u32 %s94, 1
        %s175 = scalar_lea.sflag [#allocation4], %s174
        %s176 = sand.u32 %s94, 1
        %s177 = smul.addr %s176, 64
        %s178 = scalar_lea.vmem [#allocation5], %s177
        %p179 = scmp.lt.s32.totalorder %s18, 1
        %s180 = scalar_select %p179, %s18, 1
        %s181 = smul.addr %s180, 8
        %s182 = smul.addr %s181, 8
        %s183 = scalar_lea.vmem %s0, %s182
        %v184 = vld [vmem:[%s183] sm:$0xff]
        %v185 = vld [vmem:[%s183 + $0x8] sm:$0xff]
        %v186 = vld [vmem:[%s183 + $0x10] sm:$0xff]
        %v187 = vld [vmem:[%s183 + $0x18] sm:$0xff]
        %v188 = vld [vmem:[%s183 + $0x20] sm:$0xff]
        %v189 = vld [vmem:[%s183 + $0x28] sm:$0xff]
        %v190 = vld [vmem:[%s183 + $0x30] sm:$0xff]
        %v191 = vld [vmem:[%s183 + $0x38] sm:$0xff]
        %193 = vset.pattern.permute.xlu0 0
        %194 = vperm.xlu0 %193, %v184
        %v195 = vpop.permute.xlu0 %194
        %198 = vset.pattern.permute.xlu0 0
        %199 = vperm.xlu0 %198, %v185
        %v200 = vpop.permute.xlu0 %199
        %203 = vset.pattern.permute.xlu0 0
        %204 = vperm.xlu0 %203, %v186
        %v205 = vpop.permute.xlu0 %204
        %208 = vset.pattern.permute.xlu0 0
        %209 = vperm.xlu0 %208, %v187
        %v210 = vpop.permute.xlu0 %209
        %213 = vset.pattern.permute.xlu0 0
        %214 = vperm.xlu0 %213, %v188
        %v215 = vpop.permute.xlu0 %214
        %218 = vset.pattern.permute.xlu0 0
        %219 = vperm.xlu0 %218, %v189
        %v220 = vpop.permute.xlu0 %219
        %223 = vset.pattern.permute.xlu0 0
        %224 = vperm.xlu0 %223, %v190
        %v225 = vpop.permute.xlu0 %224
        %228 = vset.pattern.permute.xlu0 0
        %229 = vperm.xlu0 %228, %v191
        %v230 = vpop.permute.xlu0 %229
        %vm232 = vcmask 23552
        %v233 = vsel %vm232, 0.0, %v195
        %v234 = vsel %vm232, 0.0, %v200
        %v235 = vsel %vm232, 0.0, %v205
        %v236 = vsel %vm232, 0.0, %v210
        %v237 = vsel %vm232, 0.0, %v215
        %v238 = vsel %vm232, 0.0, %v220
        %v239 = vsel %vm232, 0.0, %v225
        %v240 = vsel %vm232, 0.0, %v230
        %vm241 = vcmask 15360
        %v242 = vsel %vm241, 0.0, %v195
        %v243 = vsel %vm241, 0.0, %v200
        %v244 = vsel %vm241, 0.0, %v205
        %v245 = vsel %vm241, 0.0, %v210
        %v246 = vsel %vm241, 0.0, %v215
        %v247 = vsel %vm241, 0.0, %v220
        %v248 = vsel %vm241, 0.0, %v225
        %v249 = vsel %vm241, 0.0, %v230
        %vm250 = vcmask 7168
        %v251 = vsel %vm250, 0.0, %v195
        %v252 = vsel %vm250, 0.0, %v200
        %v253 = vsel %vm250, 0.0, %v205
        %v254 = vsel %vm250, 0.0, %v210
        %v255 = vsel %vm250, 0.0, %v215
        %v256 = vsel %vm250, 0.0, %v220
        %v257 = vsel %vm250, 0.0, %v225
        %v258 = vsel %vm250, 0.0, %v230
        %vm259 = vcmask 1039360
        %v260 = vsel %vm259, %v195, 0.0
        %v261 = vsel %vm259, %v200, 0.0
        %v262 = vsel %vm259, %v205, 0.0
        %v263 = vsel %vm259, %v210, 0.0
        %v264 = vsel %vm259, %v215, 0.0
        %v265 = vsel %vm259, %v220, 0.0
        %v266 = vsel %vm259, %v225, 0.0
        %v267 = vsel %vm259, %v230, 0.0
        %vm268 = vcmask 1031168
        %v269 = vsel %vm268, %v195, 0.0
        %v270 = vsel %vm268, %v200, 0.0
        %v271 = vsel %vm268, %v205, 0.0
        %v272 = vsel %vm268, %v210, 0.0
        %v273 = vsel %vm268, %v215, 0.0
        %v274 = vsel %vm268, %v220, 0.0
        %v275 = vsel %vm268, %v225, 0.0
        %v276 = vsel %vm268, %v230, 0.0
        %vm277 = vcmask 1022976
        %v278 = vsel %vm277, %v195, 0.0
        %v279 = vsel %vm277, %v200, 0.0
        %v280 = vsel %vm277, %v205, 0.0
        %v281 = vsel %vm277, %v210, 0.0
        %v282 = vsel %vm277, %v215, 0.0
        %v283 = vsel %vm277, %v220, 0.0
        %v284 = vsel %vm277, %v225, 0.0
        %v285 = vsel %vm277, %v230, 0.0
        %v286 = vld [vmem:[#allocation2] sm:$0xff]
        %v287 = vld [vmem:[#allocation2 + $0x8] sm:$0xff]
        %v288 = vld [vmem:[#allocation2 + $0x10] sm:$0xff]
        %v289 = vld [vmem:[#allocation2 + $0x18] sm:$0xff]
        %v290 = vld [vmem:[#allocation2 + $0x20] sm:$0xff]
        %v291 = vld [vmem:[#allocation2 + $0x28] sm:$0xff]
        %v292 = vld [vmem:[#allocation2 + $0x30] sm:$0xff]
        %v293 = vld [vmem:[#allocation2 + $0x38] sm:$0xff]
        %v294 = vld [vmem:[#allocation2 + $0x40] sm:$0xff]
        %v295 = vld [vmem:[#allocation2 + $0x48] sm:$0xff]
        %v296 = vld [vmem:[#allocation2 + $0x50] sm:$0xff]
        %v297 = vld [vmem:[#allocation2 + $0x58] sm:$0xff]
        %v298 = vld [vmem:[#allocation2 + $0x60] sm:$0xff]
        %v299 = vld [vmem:[#allocation2 + $0x68] sm:$0xff]
        %v300 = vld [vmem:[#allocation2 + $0x70] sm:$0xff]
        %v301 = vld [vmem:[#allocation2 + $0x78] sm:$0xff]
        %v302 = vld [vmem:[#allocation2 + $0x80] sm:$0xff]
        %v303 = vld [vmem:[#allocation2 + $0x88] sm:$0xff]
        %v304 = vld [vmem:[#allocation2 + $0x90] sm:$0xff]
        %v305 = vld [vmem:[#allocation2 + $0x98] sm:$0xff]
        %v306 = vld [vmem:[#allocation2 + $0xa0] sm:$0xff]
        %v307 = vld [vmem:[#allocation2 + $0xa8] sm:$0xff]
        %v308 = vld [vmem:[#allocation2 + $0xb0] sm:$0xff]
        %v309 = vld [vmem:[#allocation2 + $0xb8] sm:$0xff]
        %v310 = vld [vmem:[#allocation2 + $0xc0] sm:$0xff]
        %v311 = vld [vmem:[#allocation2 + $0xc8] sm:$0xff]
        %v312 = vld [vmem:[#allocation2 + $0xd0] sm:$0xff]
        %v313 = vld [vmem:[#allocation2 + $0xd8] sm:$0xff]
        %v314 = vld [vmem:[#allocation2 + $0xe0] sm:$0xff]
        %v315 = vld [vmem:[#allocation2 + $0xe8] sm:$0xff]
        %v316 = vld [vmem:[#allocation2 + $0xf0] sm:$0xff]
        %v317 = vld [vmem:[#allocation2 + $0xf8] sm:$0xff]
        %v318 = vld [vmem:[%s2] sm:$0xff]
        %v319 = vld [vmem:[%s2 + $0x8] sm:$0xff]
        %v320 = vld [vmem:[%s2 + $0x10] sm:$0xff]
        %v321 = vld [vmem:[%s2 + $0x18] sm:$0xff]
        %v322 = vld [vmem:[%s2 + $0x20] sm:$0xff]
        %v323 = vld [vmem:[%s2 + $0x28] sm:$0xff]
        %v324 = vld [vmem:[%s2 + $0x30] sm:$0xff]
        %v325 = vld [vmem:[%s2 + $0x38] sm:$0xff]
        %327 = vset.pattern.permute.xlu0 0
        %328 = vperm.xlu0 %327, %v318
        %v329 = vpop.permute.xlu0 %328
        %332 = vset.pattern.permute.xlu0 0
        %333 = vperm.xlu0 %332, %v319
        %v334 = vpop.permute.xlu0 %333
        %337 = vset.pattern.permute.xlu0 0
        %338 = vperm.xlu0 %337, %v320
        %v339 = vpop.permute.xlu0 %338
        %342 = vset.pattern.permute.xlu0 0
        %343 = vperm.xlu0 %342, %v321
        %v344 = vpop.permute.xlu0 %343
        %347 = vset.pattern.permute.xlu0 0
        %348 = vperm.xlu0 %347, %v322
        %v349 = vpop.permute.xlu0 %348
        %352 = vset.pattern.permute.xlu0 0
        %353 = vperm.xlu0 %352, %v323
        %v354 = vpop.permute.xlu0 %353
        %357 = vset.pattern.permute.xlu0 0
        %358 = vperm.xlu0 %357, %v324
        %v359 = vpop.permute.xlu0 %358
        %362 = vset.pattern.permute.xlu0 0
        %363 = vperm.xlu0 %362, %v325
        %v364 = vpop.permute.xlu0 %363
        %vm366 = vcmask 523264
        %v368 = vsel %vm366, %v289, 0
        %v371 = vsel %vm366, %v293, 0
        %v374 = vsel %vm366, %v297, 0
        %v377 = vsel %vm366, %v301, 0
        %v380 = vsel %vm366, %v305, 0
        %v383 = vsel %vm366, %v309, 0
        %v386 = vsel %vm366, %v313, 0
        %v389 = vsel %vm366, %v317, 0
        %391 = vmatprep.subr.mxu0 0.0
        %392 = vmatpush1.msra.mxu0 %v249
        %393 = vmatprep.subr.mxu0 0.0
        %394 = vmatpush1.msra.mxu0 %v248
        %395 = vmatprep.subr.mxu0 0.0
        %396 = vmatpush1.msra.mxu0 %v247
        %397 = vmatprep.subr.mxu0 0.0
        %398 = vmatpush1.msra.mxu0 %v246
        %399 = vmatprep.subr.mxu0 0.0
        %400 = vmatpush1.msra.mxu0 %v245
        %401 = vmatprep.subr.mxu0 0.0
        %402 = vmatpush1.msra.mxu0 %v244
        %403 = vmatprep.subr.mxu0 0.0
        %404 = vmatpush1.msra.mxu0 %v243
        %405 = vmatprep.subr.mxu0 0.0
        %406 = vmatpush1.msra.mxu0 %v242
        %407 = vmatprep.subr.mxu0 0.0
        %408 = vmatpush1.msra.mxu0 %v240
        %409 = vmatprep.subr.mxu0 0.0
        %410 = vmatpush1.msra.mxu0 %v239
        %411 = vmatprep.subr.mxu0 0.0
        %412 = vmatpush1.msra.mxu0 %v238
        %413 = vmatprep.subr.mxu0 0.0
        %414 = vmatpush1.msra.mxu0 %v237
        %415 = vmatprep.subr.mxu0 0.0
        %416 = vmatpush1.msra.mxu0 %v236
        %417 = vmatprep.subr.mxu0 0.0
        %418 = vmatpush1.msra.mxu0 %v235
        %419 = vmatprep.subr.mxu0 0.0
        %420 = vmatpush1.msra.mxu0 %v234
        %421 = vmatprep.subr.mxu0 0.0
        %422 = vmatpush1.msra.mxu0 %v233
        %423 = vmatprep.subr.mxu0 0.0
        %424 = vmatpush2.msra.mxu0 %v230
        %425 = vmatprep.subr.mxu0 0.0
        %426 = vmatpush2.msra.mxu0 %v225
        %427 = vmatprep.subr.mxu0 0.0
        %428 = vmatpush2.msra.mxu0 %v220
        %429 = vmatprep.subr.mxu0 0.0
        %430 = vmatpush2.msra.mxu0 %v215
        %431 = vmatprep.subr.mxu0 0.0
        %432 = vmatpush2.msra.mxu0 %v210
        %433 = vmatprep.subr.mxu0 0.0
        %434 = vmatpush2.msra.mxu0 %v205
        %435 = vmatprep.subr.mxu0 0.0
        %436 = vmatpush2.msra.mxu0 %v200
        %437 = vmatprep.subr.mxu0 0.0
        %438 = vmatpush2.msra.mxu0 %v195
        %439 = vmatprep.subr.mxu0 0.0
        %440 = vmatpush2.msra.mxu0 %v258
        %441 = vmatprep.subr.mxu0 0.0
        %442 = vmatpush2.msra.mxu0 %v257
        %443 = vmatprep.subr.mxu0 0.0
        %444 = vmatpush2.msra.mxu0 %v256
        %445 = vmatprep.subr.mxu0 0.0
        %446 = vmatpush2.msra.mxu0 %v255
        %447 = vmatprep.subr.mxu0 0.0
        %448 = vmatpush2.msra.mxu0 %v254
        %449 = vmatprep.subr.mxu0 0.0
        %450 = vmatpush2.msra.mxu0 %v253
        %451 = vmatprep.subr.mxu0 0.0
        %452 = vmatpush2.msra.mxu0 %v252
        %453 = vmatprep.subr.mxu0 0.0
        %454 = vmatpush2.msra.mxu0 %v251
        %455 = vmatprep.mubr.f32.mxu0 %v287
        %456 = vmatmul.mubr.f32.gmra.mxu0 %v286
        %v457 = vpop.f32.mrf.mxu0
        %v458 = vadd.f32 %v329, %v457
        %v459 = vpop.f32.mrf.mxu0
        %460 = vmatprep.mubr.f32.mxu0 %v291
        %461 = vmatmul.mubr.f32.gmra.mxu0 %v290
        %v462 = vpop.f32.mrf.mxu0
        %v463 = vadd.f32 %v334, %v462
        %v464 = vpop.f32.mrf.mxu0
        %465 = vmatprep.mubr.f32.mxu0 %v295
        %466 = vmatmul.mubr.f32.gmra.mxu0 %v294
        %v467 = vpop.f32.mrf.mxu0
        %v468 = vadd.f32 %v339, %v467
        %v469 = vpop.f32.mrf.mxu0
        %470 = vmatprep.mubr.f32.mxu0 %v299
        %471 = vmatmul.mubr.f32.gmra.mxu0 %v298
        %v472 = vpop.f32.mrf.mxu0
        %v473 = vadd.f32 %v344, %v472
        %v474 = vpop.f32.mrf.mxu0
        %475 = vmatprep.mubr.f32.mxu0 %v303
        %476 = vmatmul.mubr.f32.gmra.mxu0 %v302
        %v477 = vpop.f32.mrf.mxu0
        %v478 = vadd.f32 %v349, %v477
        %v479 = vpop.f32.mrf.mxu0
        %480 = vmatprep.mubr.f32.mxu0 %v307
        %481 = vmatmul.mubr.f32.gmra.mxu0 %v306
        %v482 = vpop.f32.mrf.mxu0
        %v483 = vadd.f32 %v354, %v482
        %v484 = vpop.f32.mrf.mxu0
        %485 = vmatprep.mubr.f32.mxu0 %v311
        %486 = vmatmul.mubr.f32.gmra.mxu0 %v310
        %v487 = vpop.f32.mrf.mxu0
        %v488 = vadd.f32 %v359, %v487
        %v489 = vpop.f32.mrf.mxu0
        %490 = vmatprep.mubr.f32.mxu0 %v315
        %491 = vmatmul.mubr.f32.gmra.mxu0 %v314
        %v492 = vpop.f32.mrf.mxu0
        %v493 = vadd.f32 %v364, %v492
        %v494 = vpop.f32.mrf.mxu0
        %495 = vdwg.mxu0
        %496 = vmatprep.subr.mxu0 0.0
        %497 = vmatpush1.msra.mxu0 %v276
        %498 = vmatprep.subr.mxu0 0.0
        %499 = vmatpush1.msra.mxu0 %v275
        %500 = vmatprep.subr.mxu0 0.0
        %501 = vmatpush1.msra.mxu0 %v274
        %502 = vmatprep.subr.mxu0 0.0
        %503 = vmatpush1.msra.mxu0 %v273
        %504 = vmatprep.subr.mxu0 0.0
        %505 = vmatpush1.msra.mxu0 %v272
        %506 = vmatprep.subr.mxu0 0.0
        %507 = vmatpush1.msra.mxu0 %v271
        %508 = vmatprep.subr.mxu0 0.0
        %509 = vmatpush1.msra.mxu0 %v270
        %510 = vmatprep.subr.mxu0 0.0
        %511 = vmatpush1.msra.mxu0 %v269
        %512 = vmatprep.subr.mxu0 0.0
        %513 = vmatpush1.msra.mxu0 %v267
        %514 = vmatprep.subr.mxu0 0.0
        %515 = vmatpush1.msra.mxu0 %v266
        %516 = vmatprep.subr.mxu0 0.0
        %517 = vmatpush1.msra.mxu0 %v265
        %518 = vmatprep.subr.mxu0 0.0
        %519 = vmatpush1.msra.mxu0 %v264
        %520 = vmatprep.subr.mxu0 0.0
        %521 = vmatpush1.msra.mxu0 %v263
        %522 = vmatprep.subr.mxu0 0.0
        %523 = vmatpush1.msra.mxu0 %v262
        %524 = vmatprep.subr.mxu0 0.0
        %525 = vmatpush1.msra.mxu0 %v261
        %526 = vmatprep.subr.mxu0 0.0
        %527 = vmatpush1.msra.mxu0 %v260
        %528 = vmatprep.subr.mxu0 0.0
        %529 = vmatpush2.msra.mxu0 0.0
        %530 = vmatprep.subr.mxu0 0.0
        %531 = vmatpush2.msra.mxu0 0.0
        %532 = vmatprep.subr.mxu0 0.0
        %533 = vmatpush2.msra.mxu0 0.0
        %534 = vmatprep.subr.mxu0 0.0
        %535 = vmatpush2.msra.mxu0 0.0
        %536 = vmatprep.subr.mxu0 0.0
        %537 = vmatpush2.msra.mxu0 0.0
        %538 = vmatprep.subr.mxu0 0.0
        %539 = vmatpush2.msra.mxu0 0.0
        %540 = vmatprep.subr.mxu0 0.0
        %541 = vmatpush2.msra.mxu0 0.0
        %542 = vmatprep.subr.mxu0 0.0
        %543 = vmatpush2.msra.mxu0 0.0
        %544 = vmatprep.subr.mxu0 0.0
        %545 = vmatpush2.msra.mxu0 %v285
        %546 = vmatprep.subr.mxu0 0.0
        %547 = vmatpush2.msra.mxu0 %v284
        %548 = vmatprep.subr.mxu0 0.0
        %549 = vmatpush2.msra.mxu0 %v283
        %550 = vmatprep.subr.mxu0 0.0
        %551 = vmatpush2.msra.mxu0 %v282
        %552 = vmatprep.subr.mxu0 0.0
        %553 = vmatpush2.msra.mxu0 %v281
        %554 = vmatprep.subr.mxu0 0.0
        %555 = vmatpush2.msra.mxu0 %v280
        %556 = vmatprep.subr.mxu0 0.0
        %557 = vmatpush2.msra.mxu0 %v279
        %558 = vmatprep.subr.mxu0 0.0
        %559 = vmatpush2.msra.mxu0 %v278
        %560 = vmatprep.mubr.f32.mxu0 %v368
        %561 = vmatmul.mubr.f32.gmra.mxu0 %v288
        %v562 = vpop.f32.mrf.mxu0
        %v563 = vadd.f32 %v458, %v562
        %v564 = vpop.f32.mrf.mxu0
        %565 = vmatprep.mubr.f32.mxu0 %v371
        %566 = vmatmul.mubr.f32.gmra.mxu0 %v292
        %v567 = vpop.f32.mrf.mxu0
        %v568 = vadd.f32 %v463, %v567
        %v569 = vpop.f32.mrf.mxu0
        %570 = vmatprep.mubr.f32.mxu0 %v374
        %571 = vmatmul.mubr.f32.gmra.mxu0 %v296
        %v572 = vpop.f32.mrf.mxu0
        %v573 = vadd.f32 %v468, %v572
        %v574 = vpop.f32.mrf.mxu0
        %575 = vmatprep.mubr.f32.mxu0 %v377
        %576 = vmatmul.mubr.f32.gmra.mxu0 %v300
        %v577 = vpop.f32.mrf.mxu0
        %v578 = vadd.f32 %v473, %v577
        %v579 = vpop.f32.mrf.mxu0
        %580 = vmatprep.mubr.f32.mxu0 %v380
        %581 = vmatmul.mubr.f32.gmra.mxu0 %v304
        %v582 = vpop.f32.mrf.mxu0
        %v583 = vadd.f32 %v478, %v582
        %v584 = vpop.f32.mrf.mxu0
        %585 = vmatprep.mubr.f32.mxu0 %v383
        %586 = vmatmul.mubr.f32.gmra.mxu0 %v308
        %v587 = vpop.f32.mrf.mxu0
        %v588 = vadd.f32 %v483, %v587
        %v589 = vpop.f32.mrf.mxu0
        %590 = vmatprep.mubr.f32.mxu0 %v386
        %591 = vmatmul.mubr.f32.gmra.mxu0 %v312
        %v592 = vpop.f32.mrf.mxu0
        %v593 = vadd.f32 %v488, %v592
        %v594 = vpop.f32.mrf.mxu0
        %595 = vmatprep.mubr.f32.mxu0 %v389
        %596 = vmatmul.mubr.f32.gmra.mxu0 %v316
        %v597 = vpop.f32.mrf.mxu0
        %v598 = vadd.f32 %v493, %v597
        %v599 = vpop.f32.mrf.mxu0
        %600 = vdwg.mxu0
        %v601 = vmax.f32 %v563, 0.0
        %v602 = vmax.f32 %v568, 0.0
        %v603 = vmax.f32 %v573, 0.0
        %v604 = vmax.f32 %v578, 0.0
        %v605 = vmax.f32 %v583, 0.0
        %v606 = vmax.f32 %v588, 0.0
        %v607 = vmax.f32 %v593, 0.0
        %v608 = vmax.f32 %v598, 0.0
        %617 = vrot.lane.b32.xlu0 %v601, 3
        %v618 = vpop.permute.xlu0 %617
        %619 = vrot.lane.b32.xlu0 %v602, 3
        %v620 = vpop.permute.xlu0 %619
        %621 = vrot.lane.b32.xlu0 %v603, 3
        %v622 = vpop.permute.xlu0 %621
        %623 = vrot.lane.b32.xlu0 %v604, 3
        %v624 = vpop.permute.xlu0 %623
        %625 = vrot.lane.b32.xlu0 %v605, 3
        %v626 = vpop.permute.xlu0 %625
        %627 = vrot.lane.b32.xlu0 %v606, 3
        %v628 = vpop.permute.xlu0 %627
        %629 = vrot.lane.b32.xlu0 %v607, 3
        %v630 = vpop.permute.xlu0 %629
        %631 = vrot.lane.b32.xlu0 %v608, 3
        %v632 = vpop.permute.xlu0 %631
        %v641 = vsel %vm232, 0.0, %v618
        %v642 = vsel %vm232, 0.0, %v620
        %v643 = vsel %vm232, 0.0, %v622
        %v644 = vsel %vm232, 0.0, %v624
        %v645 = vsel %vm232, 0.0, %v626
        %v646 = vsel %vm232, 0.0, %v628
        %v647 = vsel %vm232, 0.0, %v630
        %v648 = vsel %vm232, 0.0, %v632
        %649 = vrot.lane.b32.xlu0 %v601, 2
        %v650 = vpop.permute.xlu0 %649
        %651 = vrot.lane.b32.xlu0 %v602, 2
        %v652 = vpop.permute.xlu0 %651
        %653 = vrot.lane.b32.xlu0 %v603, 2
        %v654 = vpop.permute.xlu0 %653
        %655 = vrot.lane.b32.xlu0 %v604, 2
        %v656 = vpop.permute.xlu0 %655
        %657 = vrot.lane.b32.xlu0 %v605, 2
        %v658 = vpop.permute.xlu0 %657
        %659 = vrot.lane.b32.xlu0 %v606, 2
        %v660 = vpop.permute.xlu0 %659
        %661 = vrot.lane.b32.xlu0 %v607, 2
        %v662 = vpop.permute.xlu0 %661
        %663 = vrot.lane.b32.xlu0 %v608, 2
        %v664 = vpop.permute.xlu0 %663
        %v673 = vsel %vm241, 0.0, %v650
        %v674 = vsel %vm241, 0.0, %v652
        %v675 = vsel %vm241, 0.0, %v654
        %v676 = vsel %vm241, 0.0, %v656
        %v677 = vsel %vm241, 0.0, %v658
        %v678 = vsel %vm241, 0.0, %v660
        %v679 = vsel %vm241, 0.0, %v662
        %v680 = vsel %vm241, 0.0, %v664
        %681 = vrot.lane.b32.xlu0 %v601, 1
        %v682 = vpop.permute.xlu0 %681
        %683 = vrot.lane.b32.xlu0 %v602, 1
        %v684 = vpop.permute.xlu0 %683
        %685 = vrot.lane.b32.xlu0 %v603, 1
        %v686 = vpop.permute.xlu0 %685
        %687 = vrot.lane.b32.xlu0 %v604, 1
        %v688 = vpop.permute.xlu0 %687
        %689 = vrot.lane.b32.xlu0 %v605, 1
        %v690 = vpop.permute.xlu0 %689
        %691 = vrot.lane.b32.xlu0 %v606, 1
        %v692 = vpop.permute.xlu0 %691
        %693 = vrot.lane.b32.xlu0 %v607, 1
        %v694 = vpop.permute.xlu0 %693
        %695 = vrot.lane.b32.xlu0 %v608, 1
        %v696 = vpop.permute.xlu0 %695
        %v705 = vsel %vm250, 0.0, %v682
        %v706 = vsel %vm250, 0.0, %v684
        %v707 = vsel %vm250, 0.0, %v686
        %v708 = vsel %vm250, 0.0, %v688
        %v709 = vsel %vm250, 0.0, %v690
        %v710 = vsel %vm250, 0.0, %v692
        %v711 = vsel %vm250, 0.0, %v694
        %v712 = vsel %vm250, 0.0, %v696
        %713 = vrot.lane.b32.xlu0 %v601, 127
        %v714 = vpop.permute.xlu0 %713
        %715 = vrot.lane.b32.xlu0 %v602, 127
        %v716 = vpop.permute.xlu0 %715
        %717 = vrot.lane.b32.xlu0 %v603, 127
        %v718 = vpop.permute.xlu0 %717
        %719 = vrot.lane.b32.xlu0 %v604, 127
        %v720 = vpop.permute.xlu0 %719
        %721 = vrot.lane.b32.xlu0 %v605, 127
        %v722 = vpop.permute.xlu0 %721
        %723 = vrot.lane.b32.xlu0 %v606, 127
        %v724 = vpop.permute.xlu0 %723
        %725 = vrot.lane.b32.xlu0 %v607, 127
        %v726 = vpop.permute.xlu0 %725
        %727 = vrot.lane.b32.xlu0 %v608, 127
        %v728 = vpop.permute.xlu0 %727
        %v737 = vsel %vm259, %v714, 0.0
        %v738 = vsel %vm259, %v716, 0.0
        %v739 = vsel %vm259, %v718, 0.0
        %v740 = vsel %vm259, %v720, 0.0
        %v741 = vsel %vm259, %v722, 0.0
        %v742 = vsel %vm259, %v724, 0.0
        %v743 = vsel %vm259, %v726, 0.0
        %v744 = vsel %vm259, %v728, 0.0
        %745 = vrot.lane.b32.xlu0 %v601, 126
        %v746 = vpop.permute.xlu0 %745
        %747 = vrot.lane.b32.xlu0 %v602, 126
        %v748 = vpop.permute.xlu0 %747
        %749 = vrot.lane.b32.xlu0 %v603, 126
        %v750 = vpop.permute.xlu0 %749
        %751 = vrot.lane.b32.xlu0 %v604, 126
        %v752 = vpop.permute.xlu0 %751
        %753 = vrot.lane.b32.xlu0 %v605, 126
        %v754 = vpop.permute.xlu0 %753
        %755 = vrot.lane.b32.xlu0 %v606, 126
        %v756 = vpop.permute.xlu0 %755
        %757 = vrot.lane.b32.xlu0 %v607, 126
        %v758 = vpop.permute.xlu0 %757
        %759 = vrot.lane.b32.xlu0 %v608, 126
        %v760 = vpop.permute.xlu0 %759
        %v769 = vsel %vm268, %v746, 0.0
        %v770 = vsel %vm268, %v748, 0.0
        %v771 = vsel %vm268, %v750, 0.0
        %v772 = vsel %vm268, %v752, 0.0
        %v773 = vsel %vm268, %v754, 0.0
        %v774 = vsel %vm268, %v756, 0.0
        %v775 = vsel %vm268, %v758, 0.0
        %v776 = vsel %vm268, %v760, 0.0
        %777 = vrot.lane.b32.xlu0 %v601, 125
        %v778 = vpop.permute.xlu0 %777
        %779 = vrot.lane.b32.xlu0 %v602, 125
        %v780 = vpop.permute.xlu0 %779
        %781 = vrot.lane.b32.xlu0 %v603, 125
        %v782 = vpop.permute.xlu0 %781
        %783 = vrot.lane.b32.xlu0 %v604, 125
        %v784 = vpop.permute.xlu0 %783
        %785 = vrot.lane.b32.xlu0 %v605, 125
        %v786 = vpop.permute.xlu0 %785
        %787 = vrot.lane.b32.xlu0 %v606, 125
        %v788 = vpop.permute.xlu0 %787
        %789 = vrot.lane.b32.xlu0 %v607, 125
        %v790 = vpop.permute.xlu0 %789
        %791 = vrot.lane.b32.xlu0 %v608, 125
        %v792 = vpop.permute.xlu0 %791
        %v801 = vsel %vm277, %v778, 0.0
        %v802 = vsel %vm277, %v780, 0.0
        %v803 = vsel %vm277, %v782, 0.0
        %v804 = vsel %vm277, %v784, 0.0
        %v805 = vsel %vm277, %v786, 0.0
        %v806 = vsel %vm277, %v788, 0.0
        %v807 = vsel %vm277, %v790, 0.0
        %v808 = vsel %vm277, %v792, 0.0
        %s809 = scalar_lea.vmem [#allocation2], 256
        %v810 = vld [vmem:[%s809] sm:$0xff]
        %v811 = vld [vmem:[%s809 + $0x8] sm:$0xff]
        %v812 = vld [vmem:[%s809 + $0x10] sm:$0xff]
        %v813 = vld [vmem:[%s809 + $0x18] sm:$0xff]
        %v814 = vld [vmem:[%s809 + $0x20] sm:$0xff]
        %v815 = vld [vmem:[%s809 + $0x28] sm:$0xff]
        %v816 = vld [vmem:[%s809 + $0x30] sm:$0xff]
        %v817 = vld [vmem:[%s809 + $0x38] sm:$0xff]
        %v818 = vld [vmem:[%s809 + $0x40] sm:$0xff]
        %v819 = vld [vmem:[%s809 + $0x48] sm:$0xff]
        %v820 = vld [vmem:[%s809 + $0x50] sm:$0xff]
        %v821 = vld [vmem:[%s809 + $0x58] sm:$0xff]
        %v822 = vld [vmem:[%s809 + $0x60] sm:$0xff]
        %v823 = vld [vmem:[%s809 + $0x68] sm:$0xff]
        %v824 = vld [vmem:[%s809 + $0x70] sm:$0xff]
        %v825 = vld [vmem:[%s809 + $0x78] sm:$0xff]
        %v826 = vld [vmem:[%s809 + $0x80] sm:$0xff]
        %v827 = vld [vmem:[%s809 + $0x88] sm:$0xff]
        %v828 = vld [vmem:[%s809 + $0x90] sm:$0xff]
        %v829 = vld [vmem:[%s809 + $0x98] sm:$0xff]
        %v830 = vld [vmem:[%s809 + $0xa0] sm:$0xff]
        %v831 = vld [vmem:[%s809 + $0xa8] sm:$0xff]
        %v832 = vld [vmem:[%s809 + $0xb0] sm:$0xff]
        %v833 = vld [vmem:[%s809 + $0xb8] sm:$0xff]
        %v834 = vld [vmem:[%s809 + $0xc0] sm:$0xff]
        %v835 = vld [vmem:[%s809 + $0xc8] sm:$0xff]
        %v836 = vld [vmem:[%s809 + $0xd0] sm:$0xff]
        %v837 = vld [vmem:[%s809 + $0xd8] sm:$0xff]
        %v838 = vld [vmem:[%s809 + $0xe0] sm:$0xff]
        %v839 = vld [vmem:[%s809 + $0xe8] sm:$0xff]
        %v840 = vld [vmem:[%s809 + $0xf0] sm:$0xff]
        %v841 = vld [vmem:[%s809 + $0xf8] sm:$0xff]
        %s842 = scalar_lea.vmem %s2, 64
        %v843 = vld [vmem:[%s842] sm:$0xff]
        %v844 = vld [vmem:[%s842 + $0x8] sm:$0xff]
        %v845 = vld [vmem:[%s842 + $0x10] sm:$0xff]
        %v846 = vld [vmem:[%s842 + $0x18] sm:$0xff]
        %v847 = vld [vmem:[%s842 + $0x20] sm:$0xff]
        %v848 = vld [vmem:[%s842 + $0x28] sm:$0xff]
        %v849 = vld [vmem:[%s842 + $0x30] sm:$0xff]
        %v850 = vld [vmem:[%s842 + $0x38] sm:$0xff]
        %852 = vset.pattern.permute.xlu0 0
        %853 = vperm.xlu0 %852, %v843
        %v854 = vpop.permute.xlu0 %853
        %857 = vset.pattern.permute.xlu0 0
        %858 = vperm.xlu0 %857, %v844
        %v859 = vpop.permute.xlu0 %858
        %862 = vset.pattern.permute.xlu0 0
        %863 = vperm.xlu0 %862, %v845
        %v864 = vpop.permute.xlu0 %863
        %867 = vset.pattern.permute.xlu0 0
        %868 = vperm.xlu0 %867, %v846
        %v869 = vpop.permute.xlu0 %868
        %872 = vset.pattern.permute.xlu0 0
        %873 = vperm.xlu0 %872, %v847
        %v874 = vpop.permute.xlu0 %873
        %877 = vset.pattern.permute.xlu0 0
        %878 = vperm.xlu0 %877, %v848
        %v879 = vpop.permute.xlu0 %878
        %882 = vset.pattern.permute.xlu0 0
        %883 = vperm.xlu0 %882, %v849
        %v884 = vpop.permute.xlu0 %883
        %887 = vset.pattern.permute.xlu0 0
        %888 = vperm.xlu0 %887, %v850
        %v889 = vpop.permute.xlu0 %888
        %v892 = vsel %vm366, %v813, 0
        %v895 = vsel %vm366, %v817, 0
        %v898 = vsel %vm366, %v821, 0
        %v901 = vsel %vm366, %v825, 0
        %v904 = vsel %vm366, %v829, 0
        %v907 = vsel %vm366, %v833, 0
        %v910 = vsel %vm366, %v837, 0
        %v913 = vsel %vm366, %v841, 0
        %915 = vmatprep.subr.mxu0 0.0
        %916 = vmatpush1.msra.mxu0 %v680
        %917 = vmatprep.subr.mxu0 0.0
        %918 = vmatpush1.msra.mxu0 %v679
        %919 = vmatprep.subr.mxu0 0.0
        %920 = vmatpush1.msra.mxu0 %v678
        %921 = vmatprep.subr.mxu0 0.0
        %922 = vmatpush1.msra.mxu0 %v677
        %923 = vmatprep.subr.mxu0 0.0
        %924 = vmatpush1.msra.mxu0 %v676
        %925 = vmatprep.subr.mxu0 0.0
        %926 = vmatpush1.msra.mxu0 %v675
        %927 = vmatprep.subr.mxu0 0.0
        %928 = vmatpush1.msra.mxu0 %v674
        %929 = vmatprep.subr.mxu0 0.0
        %930 = vmatpush1.msra.mxu0 %v673
        %931 = vmatprep.subr.mxu0 0.0
        %932 = vmatpush1.msra.mxu0 %v648
        %933 = vmatprep.subr.mxu0 0.0
        %934 = vmatpush1.msra.mxu0 %v647
        %935 = vmatprep.subr.mxu0 0.0
        %936 = vmatpush1.msra.mxu0 %v646
        %937 = vmatprep.subr.mxu0 0.0
        %938 = vmatpush1.msra.mxu0 %v645
        %939 = vmatprep.subr.mxu0 0.0
        %940 = vmatpush1.msra.mxu0 %v644
        %941 = vmatprep.subr.mxu0 0.0
        %942 = vmatpush1.msra.mxu0 %v643
        %943 = vmatprep.subr.mxu0 0.0
        %944 = vmatpush1.msra.mxu0 %v642
        %945 = vmatprep.subr.mxu0 0.0
        %946 = vmatpush1.msra.mxu0 %v641
        %947 = vmatprep.subr.mxu0 0.0
        %948 = vmatpush2.msra.mxu0 %v608
        %949 = vmatprep.subr.mxu0 0.0
        %950 = vmatpush2.msra.mxu0 %v607
        %951 = vmatprep.subr.mxu0 0.0
        %952 = vmatpush2.msra.mxu0 %v606
        %953 = vmatprep.subr.mxu0 0.0
        %954 = vmatpush2.msra.mxu0 %v605
        %955 = vmatprep.subr.mxu0 0.0
        %956 = vmatpush2.msra.mxu0 %v604
        %957 = vmatprep.subr.mxu0 0.0
        %958 = vmatpush2.msra.mxu0 %v603
        %959 = vmatprep.subr.mxu0 0.0
        %960 = vmatpush2.msra.mxu0 %v602
        %961 = vmatprep.subr.mxu0 0.0
        %962 = vmatpush2.msra.mxu0 %v601
        %963 = vmatprep.subr.mxu0 0.0
        %964 = vmatpush2.msra.mxu0 %v712
        %965 = vmatprep.subr.mxu0 0.0
        %966 = vmatpush2.msra.mxu0 %v711
        %967 = vmatprep.subr.mxu0 0.0
        %968 = vmatpush2.msra.mxu0 %v710
        %969 = vmatprep.subr.mxu0 0.0
        %970 = vmatpush2.msra.mxu0 %v709
        %971 = vmatprep.subr.mxu0 0.0
        %972 = vmatpush2.msra.mxu0 %v708
        %973 = vmatprep.subr.mxu0 0.0
        %974 = vmatpush2.msra.mxu0 %v707
        %975 = vmatprep.subr.mxu0 0.0
        %976 = vmatpush2.msra.mxu0 %v706
        %977 = vmatprep.subr.mxu0 0.0
        %978 = vmatpush2.msra.mxu0 %v705
        %979 = vmatprep.mubr.f32.mxu0 %v811
        %980 = vmatmul.mubr.f32.gmra.mxu0 %v810
        %v981 = vpop.f32.mrf.mxu0
        %v982 = vadd.f32 %v854, %v981
        %v983 = vpop.f32.mrf.mxu0
        %984 = vmatprep.mubr.f32.mxu0 %v815
        %985 = vmatmul.mubr.f32.gmra.mxu0 %v814
        %v986 = vpop.f32.mrf.mxu0
        %v987 = vadd.f32 %v859, %v986
        %v988 = vpop.f32.mrf.mxu0
        %989 = vmatprep.mubr.f32.mxu0 %v819
        %990 = vmatmul.mubr.f32.gmra.mxu0 %v818
        %v991 = vpop.f32.mrf.mxu0
        %v992 = vadd.f32 %v864, %v991
        %v993 = vpop.f32.mrf.mxu0
        %994 = vmatprep.mubr.f32.mxu0 %v823
        %995 = vmatmul.mubr.f32.gmra.mxu0 %v822
        %v996 = vpop.f32.mrf.mxu0
        %v997 = vadd.f32 %v869, %v996
        %v998 = vpop.f32.mrf.mxu0
        %999 = vmatprep.mubr.f32.mxu0 %v827
        %1000 = vmatmul.mubr.f32.gmra.mxu0 %v826
        %v1001 = vpop.f32.mrf.mxu0
        %v1002 = vadd.f32 %v874, %v1001
        %v1003 = vpop.f32.mrf.mxu0
        %1004 = vmatprep.mubr.f32.mxu0 %v831
        %1005 = vmatmul.mubr.f32.gmra.mxu0 %v830
        %v1006 = vpop.f32.mrf.mxu0
        %v1007 = vadd.f32 %v879, %v1006
        %v1008 = vpop.f32.mrf.mxu0
        %1009 = vmatprep.mubr.f32.mxu0 %v835
        %1010 = vmatmul.mubr.f32.gmra.mxu0 %v834
        %v1011 = vpop.f32.mrf.mxu0
        %v1012 = vadd.f32 %v884, %v1011
        %v1013 = vpop.f32.mrf.mxu0
        %1014 = vmatprep.mubr.f32.mxu0 %v839
        %1015 = vmatmul.mubr.f32.gmra.mxu0 %v838
        %v1016 = vpop.f32.mrf.mxu0
        %v1017 = vadd.f32 %v889, %v1016
        %v1018 = vpop.f32.mrf.mxu0
        %1019 = vdwg.mxu0
        %1020 = vmatprep.subr.mxu0 0.0
        %1021 = vmatpush1.msra.mxu0 %v776
        %1022 = vmatprep.subr.mxu0 0.0
        %1023 = vmatpush1.msra.mxu0 %v775
        %1024 = vmatprep.subr.mxu0 0.0
        %1025 = vmatpush1.msra.mxu0 %v774
        %1026 = vmatprep.subr.mxu0 0.0
        %1027 = vmatpush1.msra.mxu0 %v773
        %1028 = vmatprep.subr.mxu0 0.0
        %1029 = vmatpush1.msra.mxu0 %v772
        %1030 = vmatprep.subr.mxu0 0.0
        %1031 = vmatpush1.msra.mxu0 %v771
        %1032 = vmatprep.subr.mxu0 0.0
        %1033 = vmatpush1.msra.mxu0 %v770
        %1034 = vmatprep.subr.mxu0 0.0
        %1035 = vmatpush1.msra.mxu0 %v769
        %1036 = vmatprep.subr.mxu0 0.0
        %1037 = vmatpush1.msra.mxu0 %v744
        %1038 = vmatprep.subr.mxu0 0.0
        %1039 = vmatpush1.msra.mxu0 %v743
        %1040 = vmatprep.subr.mxu0 0.0
        %1041 = vmatpush1.msra.mxu0 %v742
        %1042 = vmatprep.subr.mxu0 0.0
        %1043 = vmatpush1.msra.mxu0 %v741
        %1044 = vmatprep.subr.mxu0 0.0
        %1045 = vmatpush1.msra.mxu0 %v740
        %1046 = vmatprep.subr.mxu0 0.0
        %1047 = vmatpush1.msra.mxu0 %v739
        %1048 = vmatprep.subr.mxu0 0.0
        %1049 = vmatpush1.msra.mxu0 %v738
        %1050 = vmatprep.subr.mxu0 0.0
        %1051 = vmatpush1.msra.mxu0 %v737
        %1052 = vmatprep.subr.mxu0 0.0
        %1053 = vmatpush2.msra.mxu0 0.0
        %1054 = vmatprep.subr.mxu0 0.0
        %1055 = vmatpush2.msra.mxu0 0.0
        %1056 = vmatprep.subr.mxu0 0.0
        %1057 = vmatpush2.msra.mxu0 0.0
        %1058 = vmatprep.subr.mxu0 0.0
        %1059 = vmatpush2.msra.mxu0 0.0
        %1060 = vmatprep.subr.mxu0 0.0
        %1061 = vmatpush2.msra.mxu0 0.0
        %1062 = vmatprep.subr.mxu0 0.0
        %1063 = vmatpush2.msra.mxu0 0.0
        %1064 = vmatprep.subr.mxu0 0.0
        %1065 = vmatpush2.msra.mxu0 0.0
        %1066 = vmatprep.subr.mxu0 0.0
        %1067 = vmatpush2.msra.mxu0 0.0
        %1068 = vmatprep.subr.mxu0 0.0
        %1069 = vmatpush2.msra.mxu0 %v808
        %1070 = vmatprep.subr.mxu0 0.0
        %1071 = vmatpush2.msra.mxu0 %v807
        %1072 = vmatprep.subr.mxu0 0.0
        %1073 = vmatpush2.msra.mxu0 %v806
        %1074 = vmatprep.subr.mxu0 0.0
        %1075 = vmatpush2.msra.mxu0 %v805
        %1076 = vmatprep.subr.mxu0 0.0
        %1077 = vmatpush2.msra.mxu0 %v804
        %1078 = vmatprep.subr.mxu0 0.0
        %1079 = vmatpush2.msra.mxu0 %v803
        %1080 = vmatprep.subr.mxu0 0.0
        %1081 = vmatpush2.msra.mxu0 %v802
        %1082 = vmatprep.subr.mxu0 0.0
        %1083 = vmatpush2.msra.mxu0 %v801
        %1084 = vmatprep.mubr.f32.mxu0 %v892
        %1085 = vmatmul.mubr.f32.gmra.mxu0 %v812
        %v1086 = vpop.f32.mrf.mxu0
        %v1087 = vadd.f32 %v982, %v1086
        %v1088 = vpop.f32.mrf.mxu0
        %1089 = vmatprep.mubr.f32.mxu0 %v895
        %1090 = vmatmul.mubr.f32.gmra.mxu0 %v816
        %v1091 = vpop.f32.mrf.mxu0
        %v1092 = vadd.f32 %v987, %v1091
        %v1093 = vpop.f32.mrf.mxu0
        %1094 = vmatprep.mubr.f32.mxu0 %v898
        %1095 = vmatmul.mubr.f32.gmra.mxu0 %v820
        %v1096 = vpop.f32.mrf.mxu0
        %v1097 = vadd.f32 %v992, %v1096
        %v1098 = vpop.f32.mrf.mxu0
        %1099 = vmatprep.mubr.f32.mxu0 %v901
        %1100 = vmatmul.mubr.f32.gmra.mxu0 %v824
        %v1101 = vpop.f32.mrf.mxu0
        %v1102 = vadd.f32 %v997, %v1101
        %v1103 = vpop.f32.mrf.mxu0
        %1104 = vmatprep.mubr.f32.mxu0 %v904
        %1105 = vmatmul.mubr.f32.gmra.mxu0 %v828
        %v1106 = vpop.f32.mrf.mxu0
        %v1107 = vadd.f32 %v1002, %v1106
        %v1108 = vpop.f32.mrf.mxu0
        %1109 = vmatprep.mubr.f32.mxu0 %v907
        %1110 = vmatmul.mubr.f32.gmra.mxu0 %v832
        %v1111 = vpop.f32.mrf.mxu0
        %v1112 = vadd.f32 %v1007, %v1111
        %v1113 = vpop.f32.mrf.mxu0
        %1114 = vmatprep.mubr.f32.mxu0 %v910
        %1115 = vmatmul.mubr.f32.gmra.mxu0 %v836
        %v1116 = vpop.f32.mrf.mxu0
        %v1117 = vadd.f32 %v1012, %v1116
        %v1118 = vpop.f32.mrf.mxu0
        %1119 = vmatprep.mubr.f32.mxu0 %v913
        %1120 = vmatmul.mubr.f32.gmra.mxu0 %v840
        %v1121 = vpop.f32.mrf.mxu0
        %v1122 = vadd.f32 %v1017, %v1121
        %v1123 = vpop.f32.mrf.mxu0
        %1124 = vdwg.mxu0
        %v1125 = vmax.f32 %v1087, 0.0
        %v1126 = vmax.f32 %v1092, 0.0
        %v1127 = vmax.f32 %v1097, 0.0
        %v1128 = vmax.f32 %v1102, 0.0
        %v1129 = vmax.f32 %v1107, 0.0
        %v1130 = vmax.f32 %v1112, 0.0
        %v1131 = vmax.f32 %v1117, 0.0
        %v1132 = vmax.f32 %v1122, 0.0
        %1141 = vrot.lane.b32.xlu0 %v1125, 3
        %v1142 = vpop.permute.xlu0 %1141
        %1143 = vrot.lane.b32.xlu0 %v1126, 3
        %v1144 = vpop.permute.xlu0 %1143
        %1145 = vrot.lane.b32.xlu0 %v1127, 3
        %v1146 = vpop.permute.xlu0 %1145
        %1147 = vrot.lane.b32.xlu0 %v1128, 3
        %v1148 = vpop.permute.xlu0 %1147
        %1149 = vrot.lane.b32.xlu0 %v1129, 3
        %v1150 = vpop.permute.xlu0 %1149
        %1151 = vrot.lane.b32.xlu0 %v1130, 3
        %v1152 = vpop.permute.xlu0 %1151
        %1153 = vrot.lane.b32.xlu0 %v1131, 3
        %v1154 = vpop.permute.xlu0 %1153
        %1155 = vrot.lane.b32.xlu0 %v1132, 3
        %v1156 = vpop.permute.xlu0 %1155
        %v1165 = vsel %vm232, 0.0, %v1142
        %v1166 = vsel %vm232, 0.0, %v1144
        %v1167 = vsel %vm232, 0.0, %v1146
        %v1168 = vsel %vm232, 0.0, %v1148
        %v1169 = vsel %vm232, 0.0, %v1150
        %v1170 = vsel %vm232, 0.0, %v1152
        %v1171 = vsel %vm232, 0.0, %v1154
        %v1172 = vsel %vm232, 0.0, %v1156
        %1173 = vrot.lane.b32.xlu0 %v1125, 2
        %v1174 = vpop.permute.xlu0 %1173
        %1175 = vrot.lane.b32.xlu0 %v1126, 2
        %v1176 = vpop.permute.xlu0 %1175
        %1177 = vrot.lane.b32.xlu0 %v1127, 2
        %v1178 = vpop.permute.xlu0 %1177
        %1179 = vrot.lane.b32.xlu0 %v1128, 2
        %v1180 = vpop.permute.xlu0 %1179
        %1181 = vrot.lane.b32.xlu0 %v1129, 2
        %v1182 = vpop.permute.xlu0 %1181
        %1183 = vrot.lane.b32.xlu0 %v1130, 2
        %v1184 = vpop.permute.xlu0 %1183
        %1185 = vrot.lane.b32.xlu0 %v1131, 2
        %v1186 = vpop.permute.xlu0 %1185
        %1187 = vrot.lane.b32.xlu0 %v1132, 2
        %v1188 = vpop.permute.xlu0 %1187
        %v1197 = vsel %vm241, 0.0, %v1174
        %v1198 = vsel %vm241, 0.0, %v1176
        %v1199 = vsel %vm241, 0.0, %v1178
        %v1200 = vsel %vm241, 0.0, %v1180
        %v1201 = vsel %vm241, 0.0, %v1182
        %v1202 = vsel %vm241, 0.0, %v1184
        %v1203 = vsel %vm241, 0.0, %v1186
        %v1204 = vsel %vm241, 0.0, %v1188
        %1205 = vrot.lane.b32.xlu0 %v1125, 1
        %v1206 = vpop.permute.xlu0 %1205
        %1207 = vrot.lane.b32.xlu0 %v1126, 1
        %v1208 = vpop.permute.xlu0 %1207
        %1209 = vrot.lane.b32.xlu0 %v1127, 1
        %v1210 = vpop.permute.xlu0 %1209
        %1211 = vrot.lane.b32.xlu0 %v1128, 1
        %v1212 = vpop.permute.xlu0 %1211
        %1213 = vrot.lane.b32.xlu0 %v1129, 1
        %v1214 = vpop.permute.xlu0 %1213
        %1215 = vrot.lane.b32.xlu0 %v1130, 1
        %v1216 = vpop.permute.xlu0 %1215
        %1217 = vrot.lane.b32.xlu0 %v1131, 1
        %v1218 = vpop.permute.xlu0 %1217
        %1219 = vrot.lane.b32.xlu0 %v1132, 1
        %v1220 = vpop.permute.xlu0 %1219
        %v1229 = vsel %vm250, 0.0, %v1206
        %v1230 = vsel %vm250, 0.0, %v1208
        %v1231 = vsel %vm250, 0.0, %v1210
        %v1232 = vsel %vm250, 0.0, %v1212
        %v1233 = vsel %vm250, 0.0, %v1214
        %v1234 = vsel %vm250, 0.0, %v1216
        %v1235 = vsel %vm250, 0.0, %v1218
        %v1236 = vsel %vm250, 0.0, %v1220
        %1237 = vrot.lane.b32.xlu0 %v1125, 127
        %v1238 = vpop.permute.xlu0 %1237
        %1239 = vrot.lane.b32.xlu0 %v1126, 127
        %v1240 = vpop.permute.xlu0 %1239
        %1241 = vrot.lane.b32.xlu0 %v1127, 127
        %v1242 = vpop.permute.xlu0 %1241
        %1243 = vrot.lane.b32.xlu0 %v1128, 127
        %v1244 = vpop.permute.xlu0 %1243
        %1245 = vrot.lane.b32.xlu0 %v1129, 127
        %v1246 = vpop.permute.xlu0 %1245
        %1247 = vrot.lane.b32.xlu0 %v1130, 127
        %v1248 = vpop.permute.xlu0 %1247
        %1249 = vrot.lane.b32.xlu0 %v1131, 127
        %v1250 = vpop.permute.xlu0 %1249
        %1251 = vrot.lane.b32.xlu0 %v1132, 127
        %v1252 = vpop.permute.xlu0 %1251
        %v1261 = vsel %vm259, %v1238, 0.0
        %v1262 = vsel %vm259, %v1240, 0.0
        %v1263 = vsel %vm259, %v1242, 0.0
        %v1264 = vsel %vm259, %v1244, 0.0
        %v1265 = vsel %vm259, %v1246, 0.0
        %v1266 = vsel %vm259, %v1248, 0.0
        %v1267 = vsel %vm259, %v1250, 0.0
        %v1268 = vsel %vm259, %v1252, 0.0
        %1269 = vrot.lane.b32.xlu0 %v1125, 126
        %v1270 = vpop.permute.xlu0 %1269
        %1271 = vrot.lane.b32.xlu0 %v1126, 126
        %v1272 = vpop.permute.xlu0 %1271
        %1273 = vrot.lane.b32.xlu0 %v1127, 126
        %v1274 = vpop.permute.xlu0 %1273
        %1275 = vrot.lane.b32.xlu0 %v1128, 126
        %v1276 = vpop.permute.xlu0 %1275
        %1277 = vrot.lane.b32.xlu0 %v1129, 126
        %v1278 = vpop.permute.xlu0 %1277
        %1279 = vrot.lane.b32.xlu0 %v1130, 126
        %v1280 = vpop.permute.xlu0 %1279
        %1281 = vrot.lane.b32.xlu0 %v1131, 126
        %v1282 = vpop.permute.xlu0 %1281
        %1283 = vrot.lane.b32.xlu0 %v1132, 126
        %v1284 = vpop.permute.xlu0 %1283
        %v1293 = vsel %vm268, %v1270, 0.0
        %v1294 = vsel %vm268, %v1272, 0.0
        %v1295 = vsel %vm268, %v1274, 0.0
        %v1296 = vsel %vm268, %v1276, 0.0
        %v1297 = vsel %vm268, %v1278, 0.0
        %v1298 = vsel %vm268, %v1280, 0.0
        %v1299 = vsel %vm268, %v1282, 0.0
        %v1300 = vsel %vm268, %v1284, 0.0
        %1301 = vrot.lane.b32.xlu0 %v1125, 125
        %v1302 = vpop.permute.xlu0 %1301
        %1303 = vrot.lane.b32.xlu0 %v1126, 125
        %v1304 = vpop.permute.xlu0 %1303
        %1305 = vrot.lane.b32.xlu0 %v1127, 125
        %v1306 = vpop.permute.xlu0 %1305
        %1307 = vrot.lane.b32.xlu0 %v1128, 125
        %v1308 = vpop.permute.xlu0 %1307
        %1309 = vrot.lane.b32.xlu0 %v1129, 125
        %v1310 = vpop.permute.xlu0 %1309
        %1311 = vrot.lane.b32.xlu0 %v1130, 125
        %v1312 = vpop.permute.xlu0 %1311
        %1313 = vrot.lane.b32.xlu0 %v1131, 125
        %v1314 = vpop.permute.xlu0 %1313
        %1315 = vrot.lane.b32.xlu0 %v1132, 125
        %v1316 = vpop.permute.xlu0 %1315
        %v1325 = vsel %vm277, %v1302, 0.0
        %v1326 = vsel %vm277, %v1304, 0.0
        %v1327 = vsel %vm277, %v1306, 0.0
        %v1328 = vsel %vm277, %v1308, 0.0
        %v1329 = vsel %vm277, %v1310, 0.0
        %v1330 = vsel %vm277, %v1312, 0.0
        %v1331 = vsel %vm277, %v1314, 0.0
        %v1332 = vsel %vm277, %v1316, 0.0
        %s1333 = scalar_lea.vmem [#allocation2], 512
        %v1334 = vld [vmem:[%s1333] sm:$0xff]
        %v1335 = vld [vmem:[%s1333 + $0x8] sm:$0xff]
        %v1336 = vld [vmem:[%s1333 + $0x10] sm:$0xff]
        %v1337 = vld [vmem:[%s1333 + $0x18] sm:$0xff]
        %v1338 = vld [vmem:[%s1333 + $0x20] sm:$0xff]
        %v1339 = vld [vmem:[%s1333 + $0x28] sm:$0xff]
        %v1340 = vld [vmem:[%s1333 + $0x30] sm:$0xff]
        %v1341 = vld [vmem:[%s1333 + $0x38] sm:$0xff]
        %v1342 = vld [vmem:[%s1333 + $0x40] sm:$0xff]
        %v1343 = vld [vmem:[%s1333 + $0x48] sm:$0xff]
        %v1344 = vld [vmem:[%s1333 + $0x50] sm:$0xff]
        %v1345 = vld [vmem:[%s1333 + $0x58] sm:$0xff]
        %v1346 = vld [vmem:[%s1333 + $0x60] sm:$0xff]
        %v1347 = vld [vmem:[%s1333 + $0x68] sm:$0xff]
        %v1348 = vld [vmem:[%s1333 + $0x70] sm:$0xff]
        %v1349 = vld [vmem:[%s1333 + $0x78] sm:$0xff]
        %v1350 = vld [vmem:[%s1333 + $0x80] sm:$0xff]
        %v1351 = vld [vmem:[%s1333 + $0x88] sm:$0xff]
        %v1352 = vld [vmem:[%s1333 + $0x90] sm:$0xff]
        %v1353 = vld [vmem:[%s1333 + $0x98] sm:$0xff]
        %v1354 = vld [vmem:[%s1333 + $0xa0] sm:$0xff]
        %v1355 = vld [vmem:[%s1333 + $0xa8] sm:$0xff]
        %v1356 = vld [vmem:[%s1333 + $0xb0] sm:$0xff]
        %v1357 = vld [vmem:[%s1333 + $0xb8] sm:$0xff]
        %v1358 = vld [vmem:[%s1333 + $0xc0] sm:$0xff]
        %v1359 = vld [vmem:[%s1333 + $0xc8] sm:$0xff]
        %v1360 = vld [vmem:[%s1333 + $0xd0] sm:$0xff]
        %v1361 = vld [vmem:[%s1333 + $0xd8] sm:$0xff]
        %v1362 = vld [vmem:[%s1333 + $0xe0] sm:$0xff]
        %v1363 = vld [vmem:[%s1333 + $0xe8] sm:$0xff]
        %v1364 = vld [vmem:[%s1333 + $0xf0] sm:$0xff]
        %v1365 = vld [vmem:[%s1333 + $0xf8] sm:$0xff]
        %s1366 = scalar_lea.vmem %s2, 128
        %v1367 = vld [vmem:[%s1366] sm:$0xff]
        %v1368 = vld [vmem:[%s1366 + $0x8] sm:$0xff]
        %v1369 = vld [vmem:[%s1366 + $0x10] sm:$0xff]
        %v1370 = vld [vmem:[%s1366 + $0x18] sm:$0xff]
        %v1371 = vld [vmem:[%s1366 + $0x20] sm:$0xff]
        %v1372 = vld [vmem:[%s1366 + $0x28] sm:$0xff]
        %v1373 = vld [vmem:[%s1366 + $0x30] sm:$0xff]
        %v1374 = vld [vmem:[%s1366 + $0x38] sm:$0xff]
        %1376 = vset.pattern.permute.xlu0 0
        %1377 = vperm.xlu0 %1376, %v1367
        %v1378 = vpop.permute.xlu0 %1377
        %1381 = vset.pattern.permute.xlu0 0
        %1382 = vperm.xlu0 %1381, %v1368
        %v1383 = vpop.permute.xlu0 %1382
        %1386 = vset.pattern.permute.xlu0 0
        %1387 = vperm.xlu0 %1386, %v1369
        %v1388 = vpop.permute.xlu0 %1387
        %1391 = vset.pattern.permute.xlu0 0
        %1392 = vperm.xlu0 %1391, %v1370
        %v1393 = vpop.permute.xlu0 %1392
        %1396 = vset.pattern.permute.xlu0 0
        %1397 = vperm.xlu0 %1396, %v1371
        %v1398 = vpop.permute.xlu0 %1397
        %1401 = vset.pattern.permute.xlu0 0
        %1402 = vperm.xlu0 %1401, %v1372
        %v1403 = vpop.permute.xlu0 %1402
        %1406 = vset.pattern.permute.xlu0 0
        %1407 = vperm.xlu0 %1406, %v1373
        %v1408 = vpop.permute.xlu0 %1407
        %1411 = vset.pattern.permute.xlu0 0
        %1412 = vperm.xlu0 %1411, %v1374
        %v1413 = vpop.permute.xlu0 %1412
        %v1416 = vsel %vm366, %v1337, 0
        %v1419 = vsel %vm366, %v1341, 0
        %v1422 = vsel %vm366, %v1345, 0
        %v1425 = vsel %vm366, %v1349, 0
        %v1428 = vsel %vm366, %v1353, 0
        %v1431 = vsel %vm366, %v1357, 0
        %v1434 = vsel %vm366, %v1361, 0
        %v1437 = vsel %vm366, %v1365, 0
        %1439 = vmatprep.subr.mxu0 0.0
        %1440 = vmatpush1.msra.mxu0 %v1204
        %1441 = vmatprep.subr.mxu0 0.0
        %1442 = vmatpush1.msra.mxu0 %v1203
        %1443 = vmatprep.subr.mxu0 0.0
        %1444 = vmatpush1.msra.mxu0 %v1202
        %1445 = vmatprep.subr.mxu0 0.0
        %1446 = vmatpush1.msra.mxu0 %v1201
        %1447 = vmatprep.subr.mxu0 0.0
        %1448 = vmatpush1.msra.mxu0 %v1200
        %1449 = vmatprep.subr.mxu0 0.0
        %1450 = vmatpush1.msra.mxu0 %v1199
        %1451 = vmatprep.subr.mxu0 0.0
        %1452 = vmatpush1.msra.mxu0 %v1198
        %1453 = vmatprep.subr.mxu0 0.0
        %1454 = vmatpush1.msra.mxu0 %v1197
        %1455 = vmatprep.subr.mxu0 0.0
        %1456 = vmatpush1.msra.mxu0 %v1172
        %1457 = vmatprep.subr.mxu0 0.0
        %1458 = vmatpush1.msra.mxu0 %v1171
        %1459 = vmatprep.subr.mxu0 0.0
        %1460 = vmatpush1.msra.mxu0 %v1170
        %1461 = vmatprep.subr.mxu0 0.0
        %1462 = vmatpush1.msra.mxu0 %v1169
        %1463 = vmatprep.subr.mxu0 0.0
        %1464 = vmatpush1.msra.mxu0 %v1168
        %1465 = vmatprep.subr.mxu0 0.0
        %1466 = vmatpush1.msra.mxu0 %v1167
        %1467 = vmatprep.subr.mxu0 0.0
        %1468 = vmatpush1.msra.mxu0 %v1166
        %1469 = vmatprep.subr.mxu0 0.0
        %1470 = vmatpush1.msra.mxu0 %v1165
        %1471 = vmatprep.subr.mxu0 0.0
        %1472 = vmatpush2.msra.mxu0 %v1132
        %1473 = vmatprep.subr.mxu0 0.0
        %1474 = vmatpush2.msra.mxu0 %v1131
        %1475 = vmatprep.subr.mxu0 0.0
        %1476 = vmatpush2.msra.mxu0 %v1130
        %1477 = vmatprep.subr.mxu0 0.0
        %1478 = vmatpush2.msra.mxu0 %v1129
        %1479 = vmatprep.subr.mxu0 0.0
        %1480 = vmatpush2.msra.mxu0 %v1128
        %1481 = vmatprep.subr.mxu0 0.0
        %1482 = vmatpush2.msra.mxu0 %v1127
        %1483 = vmatprep.subr.mxu0 0.0
        %1484 = vmatpush2.msra.mxu0 %v1126
        %1485 = vmatprep.subr.mxu0 0.0
        %1486 = vmatpush2.msra.mxu0 %v1125
        %1487 = vmatprep.subr.mxu0 0.0
        %1488 = vmatpush2.msra.mxu0 %v1236
        %1489 = vmatprep.subr.mxu0 0.0
        %1490 = vmatpush2.msra.mxu0 %v1235
        %1491 = vmatprep.subr.mxu0 0.0
        %1492 = vmatpush2.msra.mxu0 %v1234
        %1493 = vmatprep.subr.mxu0 0.0
        %1494 = vmatpush2.msra.mxu0 %v1233
        %1495 = vmatprep.subr.mxu0 0.0
        %1496 = vmatpush2.msra.mxu0 %v1232
        %1497 = vmatprep.subr.mxu0 0.0
        %1498 = vmatpush2.msra.mxu0 %v1231
        %1499 = vmatprep.subr.mxu0 0.0
        %1500 = vmatpush2.msra.mxu0 %v1230
        %1501 = vmatprep.subr.mxu0 0.0
        %1502 = vmatpush2.msra.mxu0 %v1229
        %1503 = vmatprep.mubr.f32.mxu0 %v1335
        %1504 = vmatmul.mubr.f32.gmra.mxu0 %v1334
        %v1505 = vpop.f32.mrf.mxu0
        %v1506 = vadd.f32 %v1378, %v1505
        %v1507 = vpop.f32.mrf.mxu0
        %1508 = vmatprep.mubr.f32.mxu0 %v1339
        %1509 = vmatmul.mubr.f32.gmra.mxu0 %v1338
        %v1510 = vpop.f32.mrf.mxu0
        %v1511 = vadd.f32 %v1383, %v1510
        %v1512 = vpop.f32.mrf.mxu0
        %1513 = vmatprep.mubr.f32.mxu0 %v1343
        %1514 = vmatmul.mubr.f32.gmra.mxu0 %v1342
        %v1515 = vpop.f32.mrf.mxu0
        %v1516 = vadd.f32 %v1388, %v1515
        %v1517 = vpop.f32.mrf.mxu0
        %1518 = vmatprep.mubr.f32.mxu0 %v1347
        %1519 = vmatmul.mubr.f32.gmra.mxu0 %v1346
        %v1520 = vpop.f32.mrf.mxu0
        %v1521 = vadd.f32 %v1393, %v1520
        %v1522 = vpop.f32.mrf.mxu0
        %1523 = vmatprep.mubr.f32.mxu0 %v1351
        %1524 = vmatmul.mubr.f32.gmra.mxu0 %v1350
        %v1525 = vpop.f32.mrf.mxu0
        %v1526 = vadd.f32 %v1398, %v1525
        %v1527 = vpop.f32.mrf.mxu0
        %1528 = vmatprep.mubr.f32.mxu0 %v1355
        %1529 = vmatmul.mubr.f32.gmra.mxu0 %v1354
        %v1530 = vpop.f32.mrf.mxu0
        %v1531 = vadd.f32 %v1403, %v1530
        %v1532 = vpop.f32.mrf.mxu0
        %1533 = vmatprep.mubr.f32.mxu0 %v1359
        %1534 = vmatmul.mubr.f32.gmra.mxu0 %v1358
        %v1535 = vpop.f32.mrf.mxu0
        %v1536 = vadd.f32 %v1408, %v1535
        %v1537 = vpop.f32.mrf.mxu0
        %1538 = vmatprep.mubr.f32.mxu0 %v1363
        %1539 = vmatmul.mubr.f32.gmra.mxu0 %v1362
        %v1540 = vpop.f32.mrf.mxu0
        %v1541 = vadd.f32 %v1413, %v1540
        %v1542 = vpop.f32.mrf.mxu0
        %1543 = vdwg.mxu0
        %1544 = vmatprep.subr.mxu0 0.0
        %1545 = vmatpush1.msra.mxu0 %v1300
        %1546 = vmatprep.subr.mxu0 0.0
        %1547 = vmatpush1.msra.mxu0 %v1299
        %1548 = vmatprep.subr.mxu0 0.0
        %1549 = vmatpush1.msra.mxu0 %v1298
        %1550 = vmatprep.subr.mxu0 0.0
        %1551 = vmatpush1.msra.mxu0 %v1297
        %1552 = vmatprep.subr.mxu0 0.0
        %1553 = vmatpush1.msra.mxu0 %v1296
        %1554 = vmatprep.subr.mxu0 0.0
        %1555 = vmatpush1.msra.mxu0 %v1295
        %1556 = vmatprep.subr.mxu0 0.0
        %1557 = vmatpush1.msra.mxu0 %v1294
        %1558 = vmatprep.subr.mxu0 0.0
        %1559 = vmatpush1.msra.mxu0 %v1293
        %1560 = vmatprep.subr.mxu0 0.0
        %1561 = vmatpush1.msra.mxu0 %v1268
        %1562 = vmatprep.subr.mxu0 0.0
        %1563 = vmatpush1.msra.mxu0 %v1267
        %1564 = vmatprep.subr.mxu0 0.0
        %1565 = vmatpush1.msra.mxu0 %v1266
        %1566 = vmatprep.subr.mxu0 0.0
        %1567 = vmatpush1.msra.mxu0 %v1265
        %1568 = vmatprep.subr.mxu0 0.0
        %1569 = vmatpush1.msra.mxu0 %v1264
        %1570 = vmatprep.subr.mxu0 0.0
        %1571 = vmatpush1.msra.mxu0 %v1263
        %1572 = vmatprep.subr.mxu0 0.0
        %1573 = vmatpush1.msra.mxu0 %v1262
        %1574 = vmatprep.subr.mxu0 0.0
        %1575 = vmatpush1.msra.mxu0 %v1261
        %1576 = vmatprep.subr.mxu0 0.0
        %1577 = vmatpush2.msra.mxu0 0.0
        %1578 = vmatprep.subr.mxu0 0.0
        %1579 = vmatpush2.msra.mxu0 0.0
        %1580 = vmatprep.subr.mxu0 0.0
        %1581 = vmatpush2.msra.mxu0 0.0
        %1582 = vmatprep.subr.mxu0 0.0
        %1583 = vmatpush2.msra.mxu0 0.0
        %1584 = vmatprep.subr.mxu0 0.0
        %1585 = vmatpush2.msra.mxu0 0.0
        %1586 = vmatprep.subr.mxu0 0.0
        %1587 = vmatpush2.msra.mxu0 0.0
        %1588 = vmatprep.subr.mxu0 0.0
        %1589 = vmatpush2.msra.mxu0 0.0
        %1590 = vmatprep.subr.mxu0 0.0
        %1591 = vmatpush2.msra.mxu0 0.0
        %1592 = vmatprep.subr.mxu0 0.0
        %1593 = vmatpush2.msra.mxu0 %v1332
        %1594 = vmatprep.subr.mxu0 0.0
        %1595 = vmatpush2.msra.mxu0 %v1331
        %1596 = vmatprep.subr.mxu0 0.0
        %1597 = vmatpush2.msra.mxu0 %v1330
        %1598 = vmatprep.subr.mxu0 0.0
        %1599 = vmatpush2.msra.mxu0 %v1329
        %1600 = vmatprep.subr.mxu0 0.0
        %1601 = vmatpush2.msra.mxu0 %v1328
        %1602 = vmatprep.subr.mxu0 0.0
        %1603 = vmatpush2.msra.mxu0 %v1327
        %1604 = vmatprep.subr.mxu0 0.0
        %1605 = vmatpush2.msra.mxu0 %v1326
        %1606 = vmatprep.subr.mxu0 0.0
        %1607 = vmatpush2.msra.mxu0 %v1325
        %1608 = vmatprep.mubr.f32.mxu0 %v1416
        %1609 = vmatmul.mubr.f32.gmra.mxu0 %v1336
        %v1610 = vpop.f32.mrf.mxu0
        %v1611 = vadd.f32 %v1506, %v1610
        %v1612 = vpop.f32.mrf.mxu0
        %1613 = vmatprep.mubr.f32.mxu0 %v1419
        %1614 = vmatmul.mubr.f32.gmra.mxu0 %v1340
        %v1615 = vpop.f32.mrf.mxu0
        %v1616 = vadd.f32 %v1511, %v1615
        %v1617 = vpop.f32.mrf.mxu0
        %1618 = vmatprep.mubr.f32.mxu0 %v1422
        %1619 = vmatmul.mubr.f32.gmra.mxu0 %v1344
        %v1620 = vpop.f32.mrf.mxu0
        %v1621 = vadd.f32 %v1516, %v1620
        %v1622 = vpop.f32.mrf.mxu0
        %1623 = vmatprep.mubr.f32.mxu0 %v1425
        %1624 = vmatmul.mubr.f32.gmra.mxu0 %v1348
        %v1625 = vpop.f32.mrf.mxu0
        %v1626 = vadd.f32 %v1521, %v1625
        %v1627 = vpop.f32.mrf.mxu0
        %1628 = vmatprep.mubr.f32.mxu0 %v1428
        %1629 = vmatmul.mubr.f32.gmra.mxu0 %v1352
        %v1630 = vpop.f32.mrf.mxu0
        %v1631 = vadd.f32 %v1526, %v1630
        %v1632 = vpop.f32.mrf.mxu0
        %1633 = vmatprep.mubr.f32.mxu0 %v1431
        %1634 = vmatmul.mubr.f32.gmra.mxu0 %v1356
        %v1635 = vpop.f32.mrf.mxu0
        %v1636 = vadd.f32 %v1531, %v1635
        %v1637 = vpop.f32.mrf.mxu0
        %1638 = vmatprep.mubr.f32.mxu0 %v1434
        %1639 = vmatmul.mubr.f32.gmra.mxu0 %v1360
        %v1640 = vpop.f32.mrf.mxu0
        %v1641 = vadd.f32 %v1536, %v1640
        %v1642 = vpop.f32.mrf.mxu0
        %1643 = vmatprep.mubr.f32.mxu0 %v1437
        %1644 = vmatmul.mubr.f32.gmra.mxu0 %v1364
        %v1645 = vpop.f32.mrf.mxu0
        %v1646 = vadd.f32 %v1541, %v1645
        %v1647 = vpop.f32.mrf.mxu0
        %1648 = vdwg.mxu0
        %v1649 = vmax.f32 %v1611, 0.0
        %v1650 = vmax.f32 %v1616, 0.0
        %v1651 = vmax.f32 %v1621, 0.0
        %v1652 = vmax.f32 %v1626, 0.0
        %v1653 = vmax.f32 %v1631, 0.0
        %v1654 = vmax.f32 %v1636, 0.0
        %v1655 = vmax.f32 %v1641, 0.0
        %v1656 = vmax.f32 %v1646, 0.0
        %1657 = vst [vmem:[%s178] sm:$0xff] %v1649
        %1658 = vst [vmem:[%s178 + $0x8] sm:$0xff] %v1650
        %1659 = vst [vmem:[%s178 + $0x10] sm:$0xff] %v1651
        %1660 = vst [vmem:[%s178 + $0x18] sm:$0xff] %v1652
        %1661 = vst [vmem:[%s178 + $0x20] sm:$0xff] %v1653
        %1662 = vst [vmem:[%s178 + $0x28] sm:$0xff] %v1654
        %1663 = vst [vmem:[%s178 + $0x30] sm:$0xff] %v1655
        %1664 = vst [vmem:[%s178 + $0x38] sm:$0xff] %v1656
        %s1665 = sand.u32 %s94, 1
        %s1666 = scalar_lea.sflag [#allocation4], %s1665
        %s1667 = sand.u32 %s94, 1
        %s1668 = smul.addr %s1667, 64
        %s1669 = scalar_lea.vmem [#allocation5], %s1668
        // Predicated region
        $region37: #{tpu_custom_call.1} parent=31 // pred_check
          %p1670 = pneg %p104
        $region38: #{tpu_custom_call.1} parent=31 // pred_check_branch
          %1672 = sbr.rel (%p1670) target = $region40
        $region39: #{tpu_custom_call.1} parent=31 // pred_region
          %s1674 = ssub.s32 1024, 1024
          %1675 = vsyncadd %s1666, %s1674
          %s1676 = smul.addr %s18, 8
          %s1677 = smul.addr %s1676, 128
          %s1678 = scalar_lea.hbm %s3, %s1677
          %s1679 = sshll.u32 %s1669, 4
          %s1680 = int_to_ptr.vmem [resolvable:$true] %s1679
          %1685 = dma.vmem_to_hbm [thread:$0]  %s1680, 1024, %s1678, %s1666, 128, 128, 8
        $region40: #{tpu_custom_call.1} parent=31 // pred_fallthru
          _
      $region32: #{tpu_custom_call.1} parent=5 // pred_fallthru
        _
      %p1686 = scmp.le.s32.totalorder 2, %s13
      // Predicated region
      $region41: #{tpu_custom_call.1} parent=5 // pred_check
        %p1687 = pneg %p1686
      $region42: #{tpu_custom_call.1} parent=5 // pred_check_branch
        %1689 = sbr.rel (%p1687) target = $region44
      $region43: #{tpu_custom_call.1} parent=5 // pred_region
        %s1690 = ssub.s32 %s13, 2
        // Predicated region
        $region45: #{tpu_custom_call.1} parent=43 // pred_check
          %p1691 = pneg %p110
        $region46: #{tpu_custom_call.1} parent=43 // pred_check_branch
          %1693 = sbr.rel (%p1691) target = $region48
        $region47: #{tpu_custom_call.1} parent=43 // pred_region
          %s1694 = sand.u32 %s95, 1
          %s1695 = scalar_lea.sflag [#allocation4], %s1694
          %s1696 = sand.u32 %s95, 1
          %s1697 = smul.addr %s1696, 64
          %s1698 = scalar_lea.vmem [#allocation5], %s1697
          %1699 = dma.done %s1695, 1024
        $region48: #{tpu_custom_call.1} parent=43 // pred_fallthru
          _
      $region44: #{tpu_custom_call.1} parent=5 // pred_fallthru
        _
    $region6: #{tpu_custom_call.1} parent=1 // loop_footer
      %s17 = sadd.s32 1, %s13
    $region7: #{tpu_custom_call.1} parent=1 // loop_footer_branch
      %12 = sbr.rel target = $region3
    $region8: #{tpu_custom_call.1} parent=1 // loop_exit
      _
    %1700 = vsyncpa [#allocation3], 1
    %s1701 = scalar_lea.sflag [#allocation3], 1
    %1702 = vsyncpa %s1701, 1
    %1703 = vsyncpa [#allocation4], 1
    %s1704 = scalar_lea.sflag [#allocation4], 1
    %1705 = vsyncpa %s1704, 1

</llo_original>
